<compile_context>
chip_gen: v7x
topology: tpu7x:2x2x1
jax: 0.10.0
libtpu: 0.0.40
codegen_flags: <defaults>
</compile_context>

<pallas_src>
import math

import jax
import jax.numpy as jnp
from jax.experimental import pallas as pl
from jax.experimental.pallas import tpu as pltpu

# ---- module hyper-parameters (from LossFunction.__init__) -------------------
MARGIN_M = 1.35
SCALE_S = 64.0
CLIP_EPS = 1e-12          # self.eps
NORM_EPS = 1e-12          # F.normalize default eps

_PI = math.pi
_PI_2 = math.pi / 2.0
_PI_4 = math.pi / 4.0
_TAN_PI_8 = 0.4142135623730951
_TAN_3PI_8 = 2.414213562373095
_NEG_BIG = -1e30          # finite stand-in for -inf (avoids inf-inf traps)


# ---- float32-accurate acos / cos from basic VPU ops --------------------------
def _atan_pos(x):
    """atan(x) for x >= 0 (handles +inf). Cephes atanf-style reduction."""
    big = x > _TAN_3PI_8
    mid = x > _TAN_PI_8
    xr = jnp.where(big, -1.0 / x, jnp.where(mid, (x - 1.0) / (x + 1.0), x))
    off = jnp.where(big, _PI_2, jnp.where(mid, _PI_4, 0.0))
    z = xr * xr
    p = (((8.05374449538e-2 * z - 1.38776856032e-1) * z
          + 1.99777106478e-1) * z - 3.33329491539e-1)
    return off + xr + xr * z * p


def _acos(c):
    """acos(c), c in [-1, 1], via acos(c) = 2 * atan(sqrt((1-c)/(1+c)))."""
    c = jnp.clip(c, -1.0, 1.0)
    num = jnp.sqrt(jnp.maximum(1.0 - c, 0.0))
    den = jnp.sqrt(jnp.maximum(1.0 + c, 0.0))
    return 2.0 * _atan_pos(num / den)


def _cos_0_pi(t):
    """cos(t) for t in [0, pi] (degree-12 even polynomial after folding)."""
    flip = t > _PI_2
    u = jnp.where(flip, _PI - t, t)
    z = u * u
    p = 1.0 + z * (-0.5 + z * (1.0 / 24.0 + z * (-1.0 / 720.0 + z * (
        1.0 / 40320.0 + z * (-1.0 / 3628800.0 + z * (1.0 / 479001600.0))))))
    return jnp.where(flip, -p, p)


# ---- Pallas kernel -----------------------------------------------------------
def _asoftmax_kernel(x_ref, w_ref, winv_ref, lab_ref, loss_ref, corr_ref,
                     xn_ref, m_ref, l_ref, t_ref, amax_ref):
    ci = pl.program_id(1)
    nc = pl.num_programs(1)
    tb = x_ref.shape[0]
    tc = w_ref.shape[0]

    # ---- per batch-tile init (first class tile only) ------------------------
    @pl.when(ci == 0)
    def _init():
        xx = x_ref[...].astype(jnp.float32)
        ss = jnp.sum(xx * xx, axis=1, keepdims=True)
        xn = xx * jax.lax.rsqrt(jnp.maximum(ss, NORM_EPS * NORM_EPS))
        xn_ref[...] = xn.astype(xn_ref.dtype)      # bf16 for the MXU
        m_ref[...] = jnp.full_like(m_ref, _NEG_BIG)
        l_ref[...] = jnp.zeros_like(l_ref)
        t_ref[...] = jnp.zeros_like(t_ref)
        amax_ref[...] = jnp.zeros_like(amax_ref)

    # ---- bf16 MXU matmul (f32 accumulate); scale by 1/||w|| AFTER ------------
    raw = jax.lax.dot_general(
        xn_ref[...], w_ref[...], (((1,), (1,)), ((), ())),
        preferred_element_type=jnp.float32)                    # (tb, tc) f32
    cosine = raw * winv_ref[...]                               # (1, tc) bcast

    labels = lab_ref[...]                                      # (tb, 1) int32
    col = jax.lax.broadcasted_iota(jnp.int32, (tb, tc), 1)     # local col idx
    mask = col == (labels - ci * tc)                           # (tb, tc)

    # ---- angular margin on the label column only ----------------------------
    cos_t = jnp.sum(jnp.where(mask, cosine, 0.0), axis=1, keepdims=True)
    ang = jnp.clip(MARGIN_M * _acos(cos_t), CLIP_EPS, _PI - CLIP_EPS)
    phi_t = _cos_0_pi(ang)                                     # (tb, 1)

    # logits tile: label column -> s*phi, everything else -> s*cosine
    z = SCALE_S * jnp.where(mask, phi_t, cosine)               # (tb, tc)

    # ---- online log-sum-exp ---------------------------------------------------
    tile_max = jnp.max(z, axis=1, keepdims=True)               # (tb, 1)
    m_prev = m_ref[...]
    m_new = jnp.maximum(m_prev, tile_max)
    alpha = jnp.exp(m_prev - m_new)
    l_ref[...] = l_ref[...] * alpha + jnp.sum(jnp.exp(z - m_new),
                                              axis=1, keepdims=True)

    # ---- running argmax (int32 result, first index on ties) ------------------
    # Min-reduce over LOCAL column index in f32 (exact: local idx < tc <= 2048),
    # then convert + offset in exact int32 arithmetic (safe for any C).
    cand = jnp.where(z >= tile_max, col.astype(jnp.float32), 1e9)
    tile_arg = (jnp.min(cand, axis=1, keepdims=True).astype(jnp.int32)
                + ci * tc)                                     # (tb, 1) i32
    amax_ref[...] = jnp.where(tile_max > m_prev, tile_arg, amax_ref[...])
    m_ref[...] = m_new

    # ---- target logit: scalar per-row range test (no full-tile reduce) --------
    row_has = (labels >= ci * tc) & (labels < (ci + 1) * tc)   # (tb, 1) bool
    t_ref[...] += jnp.where(row_has, SCALE_S * phi_t, 0.0)

    # ---- finalize per-example outputs on the last class tile -----------------
    @pl.when(ci == nc - 1)
    def _finalize():
        lse = m_ref[...] + jnp.log(l_ref[...])
        loss_ref[...] = lse - t_ref[...]                       # per-example CE
        corr_ref[...] = (amax_ref[...] == labels).astype(jnp.float32)


# ---- tile pickers -------------------------------------------------------------
def _pick_tb(b, cap=512):
    """Batch tile: divides b, multiple of 8, <= cap, prefers nb >= 2 (keeps
    both v7x TensorCores busy) and 128-alignment (clean MXU passes)."""
    cands = [t for t in range(8, min(cap, b) + 1, 8) if b % t == 0]
    if not cands:
        return b                                   # block == full dim fallback
    multi = [t for t in cands if b // t >= 2] or cands
    aligned = [t for t in multi if t % 128 == 0]
    return max(aligned) if aligned else max(multi)


def _pick_tc(c, e, w_itemsize, budget_bytes=24 * 1024 * 1024):
    """Class tile: largest multiple of 128 dividing c whose double-buffered
    (tc, E) weight tile fits `budget_bytes` (v7x-safe), capped at 2048."""
    cap = (budget_bytes // (2 * e * w_itemsize)) // 128 * 128
    cap = max(128, min(cap, 2048, c))
    cands = [t for t in range(128, cap + 1, 128) if c % t == 0]
    if cands:
        return max(cands)
    return c                                       # block == full dim fallback


# ---- wrapper -----------------------------------------------------------------
def asoftmax_loss(x, weight, labels, *, tb=None, tc=None):
    """x: (B, E) f32, weight: (C, E) f32, labels: (B,) int -> (loss, prec1)."""
    b, e = x.shape
    c, e2 = weight.shape
    assert e == e2
    assert labels.shape[0] == b

    # Precompute per-class inverse norms once (f32) and stream W in bf16.
    w32 = weight.astype(jnp.float32)
    w_inv = jax.lax.rsqrt(
        jnp.maximum(jnp.sum(w32 * w32, axis=1), NORM_EPS * NORM_EPS)
    ).reshape(1, c)
    w_bf16 = weight.astype(jnp.bfloat16)

    if tb is None:
        tb = _pick_tb(b)
    if tc is None:
        tc = _pick_tc(c, e, w_bf16.dtype.itemsize)
    assert b % tb == 0 and c % tc == 0, (b, tb, c, tc)
    assert tb == b or tb % 8 == 0
    assert tc == c or tc % 128 == 0
    nb, nc = b // tb, c // tc

    labels2d = labels.astype(jnp.int32).reshape(b, 1)

    cost = pl.CostEstimate(
        flops=int(2 * b * c * e + 8 * b * c),
        transcendentals=int(b * c + 30 * b * nc),
        bytes_accessed=int(4 * b * e + 2 * c * e * nb + 4 * c * nb + 12 * b),
    )

    per_ex_loss, per_ex_corr = pl.pallas_call(
        _asoftmax_kernel,
        out_shape=(jax.ShapeDtypeStruct((b, 1), jnp.float32),
                   jax.ShapeDtypeStruct((b, 1), jnp.float32)),
        grid_spec=pltpu.PrefetchScalarGridSpec(
            num_scalar_prefetch=0,
            grid=(nb, nc),
            in_specs=[
                pl.BlockSpec((tb, e), lambda bi, ci: (bi, 0)),   # x tile
                # W tile (bf16, streamed).  If a profile shows exposed DMA at
                # batch-tile boundaries, add pipeline_mode=pl.Buffered(3).
                pl.BlockSpec((tc, e), lambda bi, ci: (ci, 0)),
                pl.BlockSpec((1, tc), lambda bi, ci: (0, ci)),   # 1/||w|| row
                pl.BlockSpec((tb, 1), lambda bi, ci: (bi, 0)),   # labels tile
            ],
            out_specs=[
                pl.BlockSpec((tb, 1), lambda bi, ci: (bi, 0)),   # per-ex loss
                pl.BlockSpec((tb, 1), lambda bi, ci: (bi, 0)),   # per-ex correct
            ],
            scratch_shapes=[
                pltpu.VMEM((tb, e), jnp.bfloat16),  # normalized x tile (MXU op)
                pltpu.VMEM((tb, 1), jnp.float32),   # running max
                pltpu.VMEM((tb, 1), jnp.float32),   # running sum-exp
                pltpu.VMEM((tb, 1), jnp.float32),   # target logit
                pltpu.VMEM((tb, 1), jnp.int32),     # running argmax
            ],
        ),
        compiler_params=pltpu.CompilerParams(
            dimension_semantics=("parallel", "arbitrary"),
            vmem_limit_bytes=48 * 1024 * 1024,
        ),
        cost_estimate=cost,
    )(x, w_bf16, w_inv, labels2d)

    loss = jnp.sum(per_ex_loss) / b
    prec1 = jnp.sum(per_ex_corr) * (100.0 / b)
    return loss, prec1


# ---- pure-JAX references (verification only) ----------------------------------
def _ref_core(xn, wn_t_cosine_fn, labels, c):
    cosine = wn_t_cosine_fn(xn)
    phi = jnp.cos(jnp.clip(MARGIN_M * jnp.arccos(jnp.clip(cosine, -1.0, 1.0)),
                           CLIP_EPS, _PI - CLIP_EPS))
    one_hot = jax.nn.one_hot(labels, c, dtype=jnp.float32)
    logits = (one_hot * phi + (1.0 - one_hot) * cosine) * SCALE_S
    lse = jax.scipy.special.logsumexp(logits, axis=1)
    tgt = jnp.take_along_axis(logits, labels[:, None], axis=1)[:, 0]
    loss = jnp.mean(lse - tgt)
    prec = jnp.mean((jnp.argmax(logits, axis=1) == labels)
                    .astype(jnp.float32)) * 100.0
    return loss, prec


def asoftmax_loss_ref_f32(x, weight, labels):
    """Original full-f32 semantics."""
    xn = x / jnp.maximum(jnp.linalg.norm(x, axis=1, keepdims=True), NORM_EPS)
    wn = weight / jnp.maximum(jnp.linalg.norm(weight, axis=1, keepdims=True),
                              NORM_EPS)
    return _ref_core(xn, lambda q: q @ wn.T, labels, weight.shape[0])


def asoftmax_loss_ref_kernel_numerics(x, weight, labels):
    """Mimics the kernel's numerics: bf16 MXU operands, f32 accumulate,
    post-matmul 1/||w|| scaling."""
    xx = x.astype(jnp.float32)
    xn = xx * jax.lax.rsqrt(
        jnp.maximum(jnp.sum(xx * xx, axis=1, keepdims=True),
                    NORM_EPS * NORM_EPS))
    xn_b = xn.astype(jnp.bfloat16).astype(jnp.float32)
    w32 = weight.astype(jnp.float32)
    w_inv = jax.lax.rsqrt(jnp.maximum(jnp.sum(w32 * w32, axis=1),
                                      NORM_EPS * NORM_EPS))
    w_b = weight.astype(jnp.bfloat16).astype(jnp.float32)

    def cos_fn(q):
        raw = jax.lax.dot_general(q, w_b, (((1,), (1,)), ((), ())),
                                  precision=jax.lax.Precision.HIGHEST)
        return raw * w_inv[None, :]

    return _ref_core(xn_b, cos_fn, labels, weight.shape[0])


if __name__ == "__main__":
    B, E, C = 32, 128, 512      # batch, embedding_size, nClasses (small demo)

    key = jax.random.PRNGKey(0)
    kx, kw, kl = jax.random.split(key, 3)
    x = jax.random.normal(kx, (B, E), dtype=jnp.float32)
    # nn.Linear(E, C, bias=False) weight: (C, E), kaiming-uniform-like bound
    bound = 1.0 / math.sqrt(E)
    weight = jax.random.uniform(kw, (C, E), dtype=jnp.float32,
                                minval=-bound, maxval=bound)
    labels = jax.random.randint(kl, (B,), 0, C, dtype=jnp.int32)

    loss, prec1 = asoftmax_loss(x, weight, labels)
    jax.block_until_ready((loss, prec1))

    # Tight check against a reference with identical (bf16-MXU) numerics.
    loss_k, prec_k = asoftmax_loss_ref_kernel_numerics(x, weight, labels)
    assert jnp.allclose(loss, loss_k, rtol=2e-3, atol=2e-3), (loss, loss_k)
    assert jnp.allclose(prec1, prec_k, rtol=1e-3, atol=1e-3), (prec1, prec_k)

    # Loose sanity check against the original full-f32 reference
    # (bf16 MXU operands shift the loss by ~0.1-1%).
    loss_f, _ = asoftmax_loss_ref_f32(x, weight, labels)
    assert jnp.allclose(loss, loss_f, rtol=3e-2, atol=3e-2), (loss, loss_f)

    print("KERNEL_OK")
</pallas_src>

<mosaic_0001>
module attributes {stable_mosaic.version = 11 : i64} {
  func.func @_asoftmax_kernel(%arg0: i32, %arg1: i32, %arg2: memref<16x128xf32, #tpu.memory_space<vmem>>, %arg3: memref<512x128xbf16, #tpu.memory_space<vmem>>, %arg4: memref<1x512xf32, #tpu.memory_space<vmem>>, %arg5: memref<16x1xi32, #tpu.memory_space<vmem>>, %arg6: memref<16x1xf32, #tpu.memory_space<vmem>>, %arg7: memref<16x1xf32, #tpu.memory_space<vmem>>, %arg8: memref<16x128xbf16, #tpu.memory_space<vmem>>, %arg9: memref<16x1xf32, #tpu.memory_space<vmem>>, %arg10: memref<16x1xf32, #tpu.memory_space<vmem>>, %arg11: memref<16x1xf32, #tpu.memory_space<vmem>>, %arg12: memref<16x1xi32, #tpu.memory_space<vmem>>) attributes {dimension_semantics = [#tpu.dimension_semantics<parallel>, #tpu.dimension_semantics<arbitrary>], iteration_bounds = array<i64: 2, 1>, scalar_prefetch = 0 : i64, scratch_operands = 5 : i64, tpu.core_type = #tpu.core_type<tc>, window_params = [{transform_indices = @transform_0, window_bounds = array<i64: 16, 128>}, {transform_indices = @transform_1, window_bounds = array<i64: 512, 128>}, {transform_indices = @transform_2, window_bounds = array<i64: 1, 512>}, {transform_indices = @transform_3, window_bounds = array<i64: 16, 1>}, {transform_indices = @transform_4, window_bounds = array<i64: 16, 1>}, {transform_indices = @transform_5, window_bounds = array<i64: 16, 1>}]} {
    %c0_i32 = arith.constant 0 : i32
    %0 = arith.cmpi eq, %arg1, %c0_i32 : i32
    %1 = arith.extui %0 : i1 to i32
    %c0_i32_0 = arith.constant 0 : i32
    %2 = arith.cmpi ne, %1, %c0_i32_0 : i32
    scf.if %2 {
      %c0_70 = arith.constant 0 : index
      %c0_71 = arith.constant 0 : index
      %158 = vector.load %arg2[%c0_70, %c0_71] : memref<16x128xf32, #tpu.memory_space<vmem>>, vector<16x128xf32>
      %159 = arith.mulf %158, %158 : vector<16x128xf32>
      %cst_72 = arith.constant dense<0.000000e+00> : vector<16xf32>
      %160 = vector.multi_reduction <add>, %159, %cst_72 [1] : vector<16x128xf32> to vector<16xf32>
      %161 = vector.shape_cast %160 : vector<16xf32> to vector<16x1xf32>
      %cst_73 = arith.constant 1.000000e-24 : f32
      %162 = vector.broadcast %cst_73 : f32 to vector<16x1xf32>
      %163 = arith.maximumf %161, %162 : vector<16x1xf32>
      %164 = math.rsqrt %163 : vector<16x1xf32>
      %165 = vector.broadcast %164 : vector<16x1xf32> to vector<16x128xf32>
      %166 = arith.mulf %158, %165 : vector<16x128xf32>
      %167 = arith.truncf %166 : vector<16x128xf32> to vector<16x128xbf16>
      %c0_74 = arith.constant 0 : index
      %c0_75 = arith.constant 0 : index
      %168 = vector.load %arg8[%c0_74, %c0_75] : memref<16x128xbf16, #tpu.memory_space<vmem>>, vector<16x128xbf16>
      tpu.vector_store %arg8[%c0_74, %c0_75], %167 {strides = array<i32>} : memref<16x128xbf16, #tpu.memory_space<vmem>>, vector<16x128xbf16>,
      %cst_76 = arith.constant -1.000000e+30 : f32
      %169 = vector.broadcast %cst_76 : f32 to vector<16x1xf32>
      %c0_77 = arith.constant 0 : index
      %c0_78 = arith.constant 0 : index
      %170 = vector.load %arg9[%c0_77, %c0_78] : memref<16x1xf32, #tpu.memory_space<vmem>>, vector<16x1xf32>
      tpu.vector_store %arg9[%c0_77, %c0_78], %169 {strides = array<i32>} : memref<16x1xf32, #tpu.memory_space<vmem>>, vector<16x1xf32>,
      %cst_79 = arith.constant 0.000000e+00 : f32
      %171 = vector.broadcast %cst_79 : f32 to vector<16x1xf32>
      %c0_80 = arith.constant 0 : index
      %c0_81 = arith.constant 0 : index
      %172 = vector.load %arg10[%c0_80, %c0_81] : memref<16x1xf32, #tpu.memory_space<vmem>>, vector<16x1xf32>
      tpu.vector_store %arg10[%c0_80, %c0_81], %171 {strides = array<i32>} : memref<16x1xf32, #tpu.memory_space<vmem>>, vector<16x1xf32>,
      %cst_82 = arith.constant 0.000000e+00 : f32
      %173 = vector.broadcast %cst_82 : f32 to vector<16x1xf32>
      %c0_83 = arith.constant 0 : index
      %c0_84 = arith.constant 0 : index
      %174 = vector.load %arg11[%c0_83, %c0_84] : memref<16x1xf32, #tpu.memory_space<vmem>>, vector<16x1xf32>
      tpu.vector_store %arg11[%c0_83, %c0_84], %173 {strides = array<i32>} : memref<16x1xf32, #tpu.memory_space<vmem>>, vector<16x1xf32>,
      %c0_i32_85 = arith.constant 0 : i32
      %175 = vector.broadcast %c0_i32_85 : i32 to vector<16x1xi32>
      %c0_86 = arith.constant 0 : index
      %c0_87 = arith.constant 0 : index
      %176 = vector.load %arg12[%c0_86, %c0_87] : memref<16x1xi32, #tpu.memory_space<vmem>>, vector<16x1xi32>
      tpu.vector_store %arg12[%c0_86, %c0_87], %175 {strides = array<i32>} : memref<16x1xi32, #tpu.memory_space<vmem>>, vector<16x1xi32>,
    } else {
    }
    %c0 = arith.constant 0 : index
    %c0_1 = arith.constant 0 : index
    %3 = vector.load %arg8[%c0, %c0_1] : memref<16x128xbf16, #tpu.memory_space<vmem>>, vector<16x128xbf16>
    %c0_2 = arith.constant 0 : index
    %c0_3 = arith.constant 0 : index
    %4 = vector.load %arg3[%c0_2, %c0_3] : memref<512x128xbf16, #tpu.memory_space<vmem>>, vector<512x128xbf16>
    %cst = arith.constant dense<0.000000e+00> : vector<16x512xf32>
    %5 = tpu.matmul %3, %4, %cst {dimension_numbers = #tpu.dot_dimension_numbers<[1], [1], [0], [0], [0, 0, 1, 0], [], []>} : vector<16x128xbf16>, vector<512x128xbf16>, vector<16x512xf32> -> vector<16x512xf32>
    %c0_4 = arith.constant 0 : index
    %c0_5 = arith.constant 0 : index
    %6 = vector.load %arg4[%c0_4, %c0_5] : memref<1x512xf32, #tpu.memory_space<vmem>>, vector<1x512xf32>
    %7 = vector.broadcast %6 : vector<1x512xf32> to vector<16x512xf32>
    %8 = arith.mulf %5, %7 : vector<16x512xf32>
    %c0_6 = arith.constant 0 : index
    %c0_7 = arith.constant 0 : index
    %9 = vector.load %arg5[%c0_6, %c0_7] : memref<16x1xi32, #tpu.memory_space<vmem>>, vector<16x1xi32>
    %10 = tpu.iota {dimensions = array<i32: 1>} : vector<16x512xi32>
    %c512_i32 = arith.constant 512 : i32
    %11 = arith.muli %arg1, %c512_i32 : i32
    %12 = vector.broadcast %11 : i32 to vector<16x1xi32>
    %13 = arith.subi %9, %12 : vector<16x1xi32>
    %14 = vector.broadcast %13 : vector<16x1xi32> to vector<16x512xi32>
    %15 = arith.cmpi eq, %10, %14 : vector<16x512xi32>
    %cst_8 = arith.constant 0.000000e+00 : f32
    %16 = vector.broadcast %cst_8 : f32 to vector<16x512xf32>
    %17 = arith.select %15, %8, %16 : vector<16x512xi1>, vector<16x512xf32>
    %cst_9 = arith.constant dense<0.000000e+00> : vector<16xf32>
    %18 = vector.multi_reduction <add>, %17, %cst_9 [1] : vector<16x512xf32> to vector<16xf32>
    %19 = vector.shape_cast %18 : vector<16xf32> to vector<16x1xf32>
    %cst_10 = arith.constant -1.000000e+00 : f32
    %cst_11 = arith.constant 1.000000e+00 : f32
    %20 = vector.broadcast %cst_10 : f32 to vector<16x1xf32>
    %21 = arith.maximumf %20, %19 : vector<16x1xf32>
    %22 = vector.broadcast %cst_11 : f32 to vector<16x1xf32>
    %23 = arith.minimumf %22, %21 : vector<16x1xf32>
    %cst_12 = arith.constant 1.000000e+00 : f32
    %24 = vector.broadcast %cst_12 : f32 to vector<16x1xf32>
    %25 = arith.subf %24, %23 : vector<16x1xf32>
    %cst_13 = arith.constant 0.000000e+00 : f32
    %26 = vector.broadcast %cst_13 : f32 to vector<16x1xf32>
    %27 = arith.maximumf %25, %26 : vector<16x1xf32>
    %28 = math.sqrt %27 : vector<16x1xf32>
    %cst_14 = arith.constant 1.000000e+00 : f32
    %29 = vector.broadcast %cst_14 : f32 to vector<16x1xf32>
    %30 = arith.addf %29, %23 : vector<16x1xf32>
    %cst_15 = arith.constant 0.000000e+00 : f32
    %31 = vector.broadcast %cst_15 : f32 to vector<16x1xf32>
    %32 = arith.maximumf %30, %31 : vector<16x1xf32>
    %33 = math.sqrt %32 : vector<16x1xf32>
    %34 = arith.divf %28, %33 : vector<16x1xf32>
    %cst_16 = arith.constant 2.41421366 : f32
    %35 = vector.broadcast %cst_16 : f32 to vector<16x1xf32>
    %36 = arith.cmpf ogt, %34, %35 : vector<16x1xf32>
    %cst_17 = arith.constant 0.414213568 : f32
    %37 = vector.broadcast %cst_17 : f32 to vector<16x1xf32>
    %38 = arith.cmpf ogt, %34, %37 : vector<16x1xf32>
    %cst_18 = arith.constant -1.000000e+00 : f32
    %39 = vector.broadcast %cst_18 : f32 to vector<16x1xf32>
    %40 = arith.divf %39, %34 : vector<16x1xf32>
    %cst_19 = arith.constant 1.000000e+00 : f32
    %41 = vector.broadcast %cst_19 : f32 to vector<16x1xf32>
    %42 = arith.subf %34, %41 : vector<16x1xf32>
    %cst_20 = arith.constant 1.000000e+00 : f32
    %43 = vector.broadcast %cst_20 : f32 to vector<16x1xf32>
    %44 = arith.addf %34, %43 : vector<16x1xf32>
    %45 = arith.divf %42, %44 : vector<16x1xf32>
    %46 = arith.select %38, %45, %34 : vector<16x1xi1>, vector<16x1xf32>
    %47 = arith.select %36, %40, %46 : vector<16x1xi1>, vector<16x1xf32>
    %cst_21 = arith.constant 0.785398185 : f32
    %cst_22 = arith.constant 0.000000e+00 : f32
    %48 = vector.broadcast %cst_21 : f32 to vector<16x1xf32>
    %49 = vector.broadcast %cst_22 : f32 to vector<16x1xf32>
    %50 = arith.select %38, %48, %49 : vector<16x1xi1>, vector<16x1xf32>
    %cst_23 = arith.constant 1.57079637 : f32
    %51 = vector.broadcast %cst_23 : f32 to vector<16x1xf32>
    %52 = arith.select %36, %51, %50 : vector<16x1xi1>, vector<16x1xf32>
    %53 = arith.mulf %47, %47 : vector<16x1xf32>
    %cst_24 = arith.constant 0.0805374458 : f32
    %54 = vector.broadcast %cst_24 : f32 to vector<16x1xf32>
    %55 = arith.mulf %54, %53 : vector<16x1xf32>
    %cst_25 = arith.constant 0.138776854 : f32
    %56 = vector.broadcast %cst_25 : f32 to vector<16x1xf32>
    %57 = arith.subf %55, %56 : vector<16x1xf32>
    %58 = arith.mulf %57, %53 : vector<16x1xf32>
    %cst_26 = arith.constant 0.199777111 : f32
    %59 = vector.broadcast %cst_26 : f32 to vector<16x1xf32>
    %60 = arith.addf %58, %59 : vector<16x1xf32>
    %61 = arith.mulf %60, %53 : vector<16x1xf32>
    %cst_27 = arith.constant 0.333329499 : f32
    %62 = vector.broadcast %cst_27 : f32 to vector<16x1xf32>
    %63 = arith.subf %61, %62 : vector<16x1xf32>
    %64 = arith.addf %52, %47 : vector<16x1xf32>
    %65 = arith.mulf %47, %53 : vector<16x1xf32>
    %66 = arith.mulf %65, %63 : vector<16x1xf32>
    %67 = arith.addf %64, %66 : vector<16x1xf32>
    %cst_28 = arith.constant 2.000000e+00 : f32
    %68 = vector.broadcast %cst_28 : f32 to vector<16x1xf32>
    %69 = arith.mulf %68, %67 : vector<16x1xf32>
    %cst_29 = arith.constant 1.350000e+00 : f32
    %70 = vector.broadcast %cst_29 : f32 to vector<16x1xf32>
    %71 = arith.mulf %70, %69 : vector<16x1xf32>
    %cst_30 = arith.constant 9.99999996E-13 : f32
    %cst_31 = arith.constant 3.14159274 : f32
    %72 = vector.broadcast %cst_30 : f32 to vector<16x1xf32>
    %73 = arith.maximumf %72, %71 : vector<16x1xf32>
    %74 = vector.broadcast %cst_31 : f32 to vector<16x1xf32>
    %75 = arith.minimumf %74, %73 : vector<16x1xf32>
    %cst_32 = arith.constant 1.57079637 : f32
    %76 = vector.broadcast %cst_32 : f32 to vector<16x1xf32>
    %77 = arith.cmpf ogt, %75, %76 : vector<16x1xf32>
    %cst_33 = arith.constant 3.14159274 : f32
    %78 = vector.broadcast %cst_33 : f32 to vector<16x1xf32>
    %79 = arith.subf %78, %75 : vector<16x1xf32>
    %80 = arith.select %77, %79, %75 : vector<16x1xi1>, vector<16x1xf32>
    %81 = arith.mulf %80, %80 : vector<16x1xf32>
    %cst_34 = arith.constant 2.08767559E-9 : f32
    %82 = vector.broadcast %cst_34 : f32 to vector<16x1xf32>
    %83 = arith.mulf %81, %82 : vector<16x1xf32>
    %cst_35 = arith.constant -2.755732E-7 : f32
    %84 = vector.broadcast %cst_35 : f32 to vector<16x1xf32>
    %85 = arith.addf %84, %83 : vector<16x1xf32>
    %86 = arith.mulf %81, %85 : vector<16x1xf32>
    %cst_36 = arith.constant 2.48015876E-5 : f32
    %87 = vector.broadcast %cst_36 : f32 to vector<16x1xf32>
    %88 = arith.addf %87, %86 : vector<16x1xf32>
    %89 = arith.mulf %81, %88 : vector<16x1xf32>
    %cst_37 = arith.constant -0.00138888892 : f32
    %90 = vector.broadcast %cst_37 : f32 to vector<16x1xf32>
    %91 = arith.addf %90, %89 : vector<16x1xf32>
    %92 = arith.mulf %81, %91 : vector<16x1xf32>
    %cst_38 = arith.constant 0.0416666679 : f32
    %93 = vector.broadcast %cst_38 : f32 to vector<16x1xf32>
    %94 = arith.addf %93, %92 : vector<16x1xf32>
    %95 = arith.mulf %81, %94 : vector<16x1xf32>
    %cst_39 = arith.constant -5.000000e-01 : f32
    %96 = vector.broadcast %cst_39 : f32 to vector<16x1xf32>
    %97 = arith.addf %96, %95 : vector<16x1xf32>
    %98 = arith.mulf %81, %97 : vector<16x1xf32>
    %cst_40 = arith.constant 1.000000e+00 : f32
    %99 = vector.broadcast %cst_40 : f32 to vector<16x1xf32>
    %100 = arith.addf %99, %98 : vector<16x1xf32>
    %cst_41 = arith.constant 0.000000e+00 : f32
    %101 = vector.broadcast %cst_41 : f32 to vector<16x1xf32>
    %102 = arith.subf %101, %100 : vector<16x1xf32>
    %103 = arith.select %77, %102, %100 : vector<16x1xi1>, vector<16x1xf32>
    %104 = vector.shape_cast %103 : vector<16x1xf32> to vector<16x1xf32>
    %105 = vector.broadcast %104 : vector<16x1xf32> to vector<16x512xf32>
    %106 = arith.select %15, %105, %8 : vector<16x512xi1>, vector<16x512xf32>
    %cst_42 = arith.constant 6.400000e+01 : f32
    %107 = vector.broadcast %cst_42 : f32 to vector<16x512xf32>
    %108 = arith.mulf %107, %106 : vector<16x512xf32>
    %cst_43 = arith.constant dense<0xFF800000> : vector<16xf32>
    %109 = vector.multi_reduction <maximumf>, %108, %cst_43 [1] : vector<16x512xf32> to vector<16xf32>
    %110 = vector.shape_cast %109 : vector<16xf32> to vector<16x1xf32>
    %c0_44 = arith.constant 0 : index
    %c0_45 = arith.constant 0 : index
    %111 = vector.load %arg9[%c0_44, %c0_45] : memref<16x1xf32, #tpu.memory_space<vmem>>, vector<16x1xf32>
    %112 = arith.maximumf %111, %110 : vector<16x1xf32>
    %113 = arith.subf %111, %112 : vector<16x1xf32>
    %114 = math.exp %113 : vector<16x1xf32>
    %c0_46 = arith.constant 0 : index
    %c0_47 = arith.constant 0 : index
    %115 = vector.load %arg10[%c0_46, %c0_47] : memref<16x1xf32, #tpu.memory_space<vmem>>, vector<16x1xf32>
    %116 = arith.mulf %115, %114 : vector<16x1xf32>
    %117 = vector.broadcast %112 : vector<16x1xf32> to vector<16x512xf32>
    %118 = arith.subf %108, %117 : vector<16x512xf32>
    %119 = math.exp %118 : vector<16x512xf32>
    %cst_48 = arith.constant dense<0.000000e+00> : vector<16xf32>
    %120 = vector.multi_reduction <add>, %119, %cst_48 [1] : vector<16x512xf32> to vector<16xf32>
    %121 = vector.shape_cast %120 : vector<16xf32> to vector<16x1xf32>
    %122 = arith.addf %116, %121 : vector<16x1xf32>
    %c0_49 = arith.constant 0 : index
    %c0_50 = arith.constant 0 : index
    %123 = vector.load %arg10[%c0_49, %c0_50] : memref<16x1xf32, #tpu.memory_space<vmem>>, vector<16x1xf32>
    tpu.vector_store %arg10[%c0_49, %c0_50], %122 {strides = array<i32>} : memref<16x1xf32, #tpu.memory_space<vmem>>, vector<16x1xf32>,
    %124 = vector.broadcast %110 : vector<16x1xf32> to vector<16x512xf32>
    %125 = arith.cmpf oge, %108, %124 : vector<16x512xf32>
    %126 = arith.sitofp %10 : vector<16x512xi32> to vector<16x512xf32>
    %cst_51 = arith.constant 1.000000e+09 : f32
    %127 = vector.broadcast %cst_51 : f32 to vector<16x512xf32>
    %128 = arith.select %125, %126, %127 : vector<16x512xi1>, vector<16x512xf32>
    %cst_52 = arith.constant dense<0x7F800000> : vector<16xf32>
    %129 = vector.multi_reduction <minimumf>, %128, %cst_52 [1] : vector<16x512xf32> to vector<16xf32>
    %130 = vector.shape_cast %129 : vector<16xf32> to vector<16x1xf32>
    %131 = arith.fptosi %130 : vector<16x1xf32> to vector<16x1xi32>
    %c512_i32_53 = arith.constant 512 : i32
    %132 = arith.muli %arg1, %c512_i32_53 : i32
    %133 = vector.broadcast %132 : i32 to vector<16x1xi32>
    %134 = arith.addi %131, %133 : vector<16x1xi32>
    %135 = arith.cmpf ogt, %110, %111 : vector<16x1xf32>
    %c0_54 = arith.constant 0 : index
    %c0_55 = arith.constant 0 : index
    %136 = vector.load %arg12[%c0_54, %c0_55] : memref<16x1xi32, #tpu.memory_space<vmem>>, vector<16x1xi32>
    %137 = arith.select %135, %134, %136 : vector<16x1xi1>, vector<16x1xi32>
    %c0_56 = arith.constant 0 : index
    %c0_57 = arith.constant 0 : index
    %138 = vector.load %arg12[%c0_56, %c0_57] : memref<16x1xi32, #tpu.memory_space<vmem>>, vector<16x1xi32>
    tpu.vector_store %arg12[%c0_56, %c0_57], %137 {strides = array<i32>} : memref<16x1xi32, #tpu.memory_space<vmem>>, vector<16x1xi32>,
    %c0_58 = arith.constant 0 : index
    %c0_59 = arith.constant 0 : index
    %139 = vector.load %arg9[%c0_58, %c0_59] : memref<16x1xf32, #tpu.memory_space<vmem>>, vector<16x1xf32>
    tpu.vector_store %arg9[%c0_58, %c0_59], %112 {strides = array<i32>} : memref<16x1xf32, #tpu.memory_space<vmem>>, vector<16x1xf32>,
    %c512_i32_60 = arith.constant 512 : i32
    %140 = arith.muli %arg1, %c512_i32_60 : i32
    %141 = vector.broadcast %140 : i32 to vector<16x1xi32>
    %142 = arith.cmpi sge, %9, %141 : vector<16x1xi32>
    %c1_i32 = arith.constant 1 : i32
    %143 = arith.addi %arg1, %c1_i32 : i32
    %c512_i32_61 = arith.constant 512 : i32
    %144 = arith.muli %143, %c512_i32_61 : i32
    %145 = vector.broadcast %144 : i32 to vector<16x1xi32>
    %146 = arith.cmpi slt, %9, %145 : vector<16x1xi32>
    %147 = arith.andi %142, %146 : vector<16x1xi1>
    %c0_62 = arith.constant 0 : index
    %c0_63 = arith.constant 0 : index
    %148 = vector.load %arg11[%c0_62, %c0_63] : memref<16x1xf32, #tpu.memory_space<vmem>>, vector<16x1xf32>
    %cst_64 = arith.constant 6.400000e+01 : f32
    %149 = vector.broadcast %cst_64 : f32 to vector<16x1xf32>
    %150 = arith.mulf %149, %103 : vector<16x1xf32>
    %cst_65 = arith.constant 0.000000e+00 : f32
    %151 = vector.broadcast %cst_65 : f32 to vector<16x1xf32>
    %152 = arith.select %147, %150, %151 : vector<16x1xi1>, vector<16x1xf32>
    %153 = arith.addf %148, %152 : vector<16x1xf32>
    %c0_66 = arith.constant 0 : index
    %c0_67 = arith.constant 0 : index
    %154 = vector.load %arg11[%c0_66, %c0_67] : memref<16x1xf32, #tpu.memory_space<vmem>>, vector<16x1xf32>
    tpu.vector_store %arg11[%c0_66, %c0_67], %153 {strides = array<i32>} : memref<16x1xf32, #tpu.memory_space<vmem>>, vector<16x1xf32>,
    %c0_i32_68 = arith.constant 0 : i32
    %155 = arith.cmpi eq, %arg1, %c0_i32_68 : i32
    %156 = arith.extui %155 : i1 to i32
    %c0_i32_69 = arith.constant 0 : i32
    %157 = arith.cmpi ne, %156, %c0_i32_69 : i32
    scf.if %157 {
      %c0_70 = arith.constant 0 : index
      %c0_71 = arith.constant 0 : index
      %158 = vector.load %arg9[%c0_70, %c0_71] : memref<16x1xf32, #tpu.memory_space<vmem>>, vector<16x1xf32>
      %c0_72 = arith.constant 0 : index
      %c0_73 = arith.constant 0 : index
      %159 = vector.load %arg10[%c0_72, %c0_73] : memref<16x1xf32, #tpu.memory_space<vmem>>, vector<16x1xf32>
      %160 = math.log %159 : vector<16x1xf32>
      %161 = arith.addf %158, %160 : vector<16x1xf32>
      %c0_74 = arith.constant 0 : index
      %c0_75 = arith.constant 0 : index
      %162 = vector.load %arg11[%c0_74, %c0_75] : memref<16x1xf32, #tpu.memory_space<vmem>>, vector<16x1xf32>
      %163 = arith.subf %161, %162 : vector<16x1xf32>
      %c0_76 = arith.constant 0 : index
      %c0_77 = arith.constant 0 : index
      %164 = vector.load %arg6[%c0_76, %c0_77] : memref<16x1xf32, #tpu.memory_space<vmem>>, vector<16x1xf32>
      tpu.vector_store %arg6[%c0_76, %c0_77], %163 {strides = array<i32>} : memref<16x1xf32, #tpu.memory_space<vmem>>, vector<16x1xf32>,
      %c0_78 = arith.constant 0 : index
      %c0_79 = arith.constant 0 : index
      %165 = vector.load %arg12[%c0_78, %c0_79] : memref<16x1xi32, #tpu.memory_space<vmem>>, vector<16x1xi32>
      %166 = arith.cmpi eq, %165, %9 : vector<16x1xi32>
      %167 = arith.extui %166 : vector<16x1xi1> to vector<16x1xi32>
      %168 = arith.sitofp %167 : vector<16x1xi32> to vector<16x1xf32>
      %c0_80 = arith.constant 0 : index
      %c0_81 = arith.constant 0 : index
      %169 = vector.load %arg7[%c0_80, %c0_81] : memref<16x1xf32, #tpu.memory_space<vmem>>, vector<16x1xf32>
      tpu.vector_store %arg7[%c0_80, %c0_81], %168 {strides = array<i32>} : memref<16x1xf32, #tpu.memory_space<vmem>>, vector<16x1xf32>,
    } else {
    }
    return
  }
  func.func @transform_0(%arg0: i32, %arg1: i32) -> (i32, i32) {
    %c0_i32 = arith.constant 0 : i32
    %c0_i32_0 = arith.constant 0 : i32
    return %arg0, %c0_i32 : i32, i32
  }
  func.func @transform_1(%arg0: i32, %arg1: i32) -> (i32, i32) {
    %c0_i32 = arith.constant 0 : i32
    %c0_i32_0 = arith.constant 0 : i32
    return %arg1, %c0_i32 : i32, i32
  }
  func.func @transform_2(%arg0: i32, %arg1: i32) -> (i32, i32) {
    %c0_i32 = arith.constant 0 : i32
    %c0_i32_0 = arith.constant 0 : i32
    return %c0_i32, %arg1 : i32, i32
  }
  func.func @transform_3(%arg0: i32, %arg1: i32) -> (i32, i32) {
    %c0_i32 = arith.constant 0 : i32
    %c0_i32_0 = arith.constant 0 : i32
    return %arg0, %c0_i32 : i32, i32
  }
  func.func @transform_4(%arg0: i32, %arg1: i32) -> (i32, i32) {
    %c0_i32 = arith.constant 0 : i32
    %c0_i32_0 = arith.constant 0 : i32
    return %arg0, %c0_i32 : i32, i32
  }
  func.func @transform_5(%arg0: i32, %arg1: i32) -> (i32, i32) {
    %c0_i32 = arith.constant 0 : i32
    %c0_i32_0 = arith.constant 0 : i32
    return %arg0, %c0_i32 : i32, i32
  }
}

</mosaic_0001>

<llo_original>
// kernel: tpu_custom_call.1
$region0: #{tpu_custom_call.1}
  #allocation0 [shape = 'u32[]', space=smem, size = 0x4, offset = 0x4, fixed_abs, tag = 'smem constant byte address 0x4 - core index']
  #allocation1 [shape = 'u32[144,128]{1,0:T(1,128)}', space=vmem, size = 0x12000, scoped, tag = 'internal scratch']
  #allocation2 [shape = 'bf16[16,128]{1,0:T(16,128)(2,1)}', space=vmem, size = 0x1000, scoped, tag = 'scratch operand']
  #allocation3 [shape = 'f32[16,1]{1,0:T(8,128)}', space=vmem, size = 0x2000, scoped, tag = 'scratch operand']
  #allocation4 [shape = 'f32[16,1]{1,0:T(8,128)}', space=vmem, size = 0x2000, scoped, tag = 'scratch operand']
  #allocation5 [shape = 'f32[16,1]{1,0:T(8,128)}', space=vmem, size = 0x2000, scoped, tag = 'scratch operand']
  #allocation6 [shape = 's32[16,1]{1,0:T(8,128)}', space=vmem, size = 0x2000, scoped, tag = 'scratch operand']
  %s0 = inlined_call_operand.vmem [shape: f32[32,128], index: 0, kind: input, shape index: {}]
  %s1 = inlined_call_operand.hbm [shape: bf16[512,128], index: 1, kind: input, shape index: {}]
  %s2 = inlined_call_operand.vmem [shape: f32[1,512], index: 2, kind: input, shape index: {}]
  %s3 = inlined_call_operand.vmem [shape: s32[32,1], index: 3, kind: input, shape index: {}]
  %s4 = inlined_call_operand.vmem [shape: f32[32,1], index: 4, kind: output, shape index: {0}]
  %s5 = inlined_call_operand.vmem [shape: f32[32,1], index: 5, kind: output, shape index: {1}]
  %6 = xla_tuple %s4, %s5
  %s7 = sld [smem:[#allocation0]]
  $region69: #{tpu_custom_call.1} parent=0
    _
  %s9 = ssub.s32 1, %s7
  %s10 = scalar_select 0, %s9, %s7
  $region1: #{tpu_custom_call.1} parent=0
    #allocation7 [shape = 'u8[131072]{0}', space=vmem, size = 0x20000, scoped, tag = 'input window, operand 1, single buffered']
    #allocation8 [shape = 's32[2]{0}', space=sflag, size = 0x8, scoped, tag = 'scoped memory for tpu_custom_call.1']
    %11 = vsyncpa [#allocation8], 0
    loop: start=0, step=1, limit=4
    $region2: #{tpu_custom_call.1} parent=1 // loop_pre_header
      _
    $region3: #{tpu_custom_call.1} parent=1 // loop_header
      %s13 = sphi 0, %s17
      %p14 = scmp.ge.s32.totalorder %s13, 4
      %s20 = sphi 0, %s32
      %s21 = sphi 0, %s28
      %s22 = sphi 0, %s20
      %s23 = sphi 0, %s21
      %s24 = sphi 0, %s22
      %s25 = sphi 0, %s23
      %s35 = sphi 0, %s37
      %s38 = sphi 0, %s35
      %s39 = sphi 0, %s38
      %s55 = sphi 0, %s39
      %s61 = sphi 0, %s63
      %s64 = sphi 0, %s61
      %s65 = sphi 0, %s64
      %s81 = sphi 0, %s65
      %s87 = sphi 0, %s89
      %s90 = sphi 0, %s87
      %s91 = sphi 0, %s90
      %s107 = sphi 0, %s91
      %s113 = sphi 0, %s115
      %s116 = sphi 0, %s113
      %s117 = sphi 0, %s116
      %s133 = sphi 0, %s117
      %s139 = sphi 0, %s141
      %s142 = sphi 0, %s139
      %s143 = sphi 0, %s142
      %s159 = sphi 0, %s143
      %s165 = sphi 0, %s167
      %s168 = sphi 0, %s165
      %s169 = sphi 0, %s168
      %s185 = sphi 0, %s169
    $region4: #{tpu_custom_call.1} parent=1 // loop_header_branch
      %16 = sbr.rel (%p14) target = $region8
    $region5: #{tpu_custom_call.1} parent=1 // loop_body
      %s18 = ssub.s32 %s13, 1
      %s19 = ssub.s32 %s13, 2
      %s26 = sadd.s32 1, %s21
      %p27 = scmp.ge.s32.totalorder %s26, 1
      %s28 = scalar_select %p27, 0, %s26
      %s29 = sadd.s32 1, %s20
      %s30 = scalar_select %p27, %s29, %s20
      %p31 = scmp.ge.s32.totalorder %s30, 2
      %s32 = scalar_select %p31, 0, %s30
      %s33 = ssub.s32 %s20, %s32
      %p34 = scmp.eq.s32.totalorder %s33, 0
      %s36 = sadd.s32 %s35, 1
      %s37 = scalar_select %p34, %s35, %s36
      %p40 = pneg %p34
      %p41 = scmp.eq.s32.totalorder %s13, 1
      %p42 = por %p40, %p41
      %p43 = scmp.ne.s32.totalorder %s35, %s38
      %p44 = scmp.eq.s32.totalorder %s13, 0
      %p45 = por %p43, %p44
      %p46 = scmp.ne.s32.totalorder %s35, %s38
      %p47 = scmp.eq.s32.totalorder %s18, 1
      %p48 = por %p46, %p47
      %p49 = scmp.ne.s32.totalorder %s38, %s39
      %p50 = scmp.eq.s32.totalorder %s18, 0
      %p51 = por %p49, %p50
      %p52 = scmp.ne.s32.totalorder %s38, %s39
      %p53 = scmp.eq.s32.totalorder %s19, 1
      %p54 = por %p52, %p53
      %p56 = scmp.ne.s32.totalorder %s39, %s55
      %p57 = scmp.eq.s32.totalorder %s19, 0
      %p58 = por %p56, %p57
      %s59 = ssub.s32 %s21, %s28
      %p60 = scmp.eq.s32.totalorder %s59, 0
      %s62 = sadd.s32 %s61, 1
      %s63 = scalar_select %p60, %s61, %s62
      %p66 = pneg %p60
      %p67 = scmp.eq.s32.totalorder %s13, 1
      %p68 = por %p66, %p67
      %p69 = scmp.ne.s32.totalorder %s61, %s64
      %p70 = scmp.eq.s32.totalorder %s13, 0
      %p71 = por %p69, %p70
      %p72 = scmp.ne.s32.totalorder %s61, %s64
      %p73 = scmp.eq.s32.totalorder %s18, 1
      %p74 = por %p72, %p73
      %p75 = scmp.ne.s32.totalorder %s64, %s65
      %p76 = scmp.eq.s32.totalorder %s18, 0
      %p77 = por %p75, %p76
      %p78 = scmp.ne.s32.totalorder %s64, %s65
      %p79 = scmp.eq.s32.totalorder %s19, 1
      %p80 = por %p78, %p79
      %p82 = scmp.ne.s32.totalorder %s65, %s81
      %p83 = scmp.eq.s32.totalorder %s19, 0
      %p84 = por %p82, %p83
      %s85 = ssub.s32 %s21, %s28
      %p86 = scmp.eq.s32.totalorder %s85, 0
      %s88 = sadd.s32 %s87, 1
      %s89 = scalar_select %p86, %s87, %s88
      %p92 = pneg %p86
      %p93 = scmp.eq.s32.totalorder %s13, 1
      %p94 = por %p92, %p93
      %p95 = scmp.ne.s32.totalorder %s87, %s90
      %p96 = scmp.eq.s32.totalorder %s13, 0
      %p97 = por %p95, %p96
      %p98 = scmp.ne.s32.totalorder %s87, %s90
      %p99 = scmp.eq.s32.totalorder %s18, 1
      %p100 = por %p98, %p99
      %p101 = scmp.ne.s32.totalorder %s90, %s91
      %p102 = scmp.eq.s32.totalorder %s18, 0
      %p103 = por %p101, %p102
      %p104 = scmp.ne.s32.totalorder %s90, %s91
      %p105 = scmp.eq.s32.totalorder %s19, 1
      %p106 = por %p104, %p105
      %p108 = scmp.ne.s32.totalorder %s91, %s107
      %p109 = scmp.eq.s32.totalorder %s19, 0
      %p110 = por %p108, %p109
      %s111 = ssub.s32 %s20, %s32
      %p112 = scmp.eq.s32.totalorder %s111, 0
      %s114 = sadd.s32 %s113, 1
      %s115 = scalar_select %p112, %s113, %s114
      %p118 = pneg %p112
      %p119 = scmp.eq.s32.totalorder %s13, 1
      %p120 = por %p118, %p119
      %p121 = scmp.ne.s32.totalorder %s113, %s116
      %p122 = scmp.eq.s32.totalorder %s13, 0
      %p123 = por %p121, %p122
      %p124 = scmp.ne.s32.totalorder %s113, %s116
      %p125 = scmp.eq.s32.totalorder %s18, 1
      %p126 = por %p124, %p125
      %p127 = scmp.ne.s32.totalorder %s116, %s117
      %p128 = scmp.eq.s32.totalorder %s18, 0
      %p129 = por %p127, %p128
      %p130 = scmp.ne.s32.totalorder %s116, %s117
      %p131 = scmp.eq.s32.totalorder %s19, 1
      %p132 = por %p130, %p131
      %p134 = scmp.ne.s32.totalorder %s117, %s133
      %p135 = scmp.eq.s32.totalorder %s19, 0
      %p136 = por %p134, %p135
      %s137 = ssub.s32 %s20, %s32
      %p138 = scmp.eq.s32.totalorder %s137, 0
      %s140 = sadd.s32 %s139, 1
      %s141 = scalar_select %p138, %s139, %s140
      %p144 = pneg %p138
      %p145 = scmp.eq.s32.totalorder %s13, 1
      %p146 = por %p144, %p145
      %p147 = scmp.ne.s32.totalorder %s139, %s142
      %p148 = scmp.eq.s32.totalorder %s13, 0
      %p149 = por %p147, %p148
      %p150 = scmp.ne.s32.totalorder %s139, %s142
      %p151 = scmp.eq.s32.totalorder %s18, 1
      %p152 = por %p150, %p151
      %p153 = scmp.ne.s32.totalorder %s142, %s143
      %p154 = scmp.eq.s32.totalorder %s18, 0
      %p155 = por %p153, %p154
      %p156 = scmp.ne.s32.totalorder %s142, %s143
      %p157 = scmp.eq.s32.totalorder %s19, 1
      %p158 = por %p156, %p157
      %p160 = scmp.ne.s32.totalorder %s143, %s159
      %p161 = scmp.eq.s32.totalorder %s19, 0
      %p162 = por %p160, %p161
      %s163 = ssub.s32 %s20, %s32
      %p164 = scmp.eq.s32.totalorder %s163, 0
      %s166 = sadd.s32 %s165, 1
      %s167 = scalar_select %p164, %s165, %s166
      %p170 = pneg %p164
      %p171 = scmp.eq.s32.totalorder %s13, 1
      %p172 = por %p170, %p171
      %p173 = scmp.ne.s32.totalorder %s165, %s168
      %p174 = scmp.eq.s32.totalorder %s13, 0
      %p175 = por %p173, %p174
      %p176 = scmp.ne.s32.totalorder %s165, %s168
      %p177 = scmp.eq.s32.totalorder %s18, 1
      %p178 = por %p176, %p177
      %p179 = scmp.ne.s32.totalorder %s168, %s169
      %p180 = scmp.eq.s32.totalorder %s18, 0
      %p181 = por %p179, %p180
      %p182 = scmp.ne.s32.totalorder %s168, %s169
      %p183 = scmp.eq.s32.totalorder %s19, 1
      %p184 = por %p182, %p183
      %p186 = scmp.ne.s32.totalorder %s169, %s185
      %p187 = scmp.eq.s32.totalorder %s19, 0
      %p188 = por %p186, %p187
      %p189 = scmp.le.s32.totalorder 1, %s13
      %p190 = scmp.lt.s32.totalorder %s13, 3
      %p191 = pnand %p189, %p190
      %p192 = pneg %p191
      // Predicated region
      $region9: #{tpu_custom_call.1} parent=5 // pred_check
        _
      $region10: #{tpu_custom_call.1} parent=5 // pred_check_branch
        %194 = sbr.rel (%p191) target = $region12
      $region11: #{tpu_custom_call.1} parent=5 // pred_region
        %s195 = ssub.s32 %s13, 1
        // Predicated region
        $region13: #{tpu_custom_call.1} parent=11 // pred_check
          %p196 = pneg %p77
        $region14: #{tpu_custom_call.1} parent=11 // pred_check_branch
          %198 = sbr.rel (%p196) target = $region16
        $region15: #{tpu_custom_call.1} parent=11 // pred_region
          %s199 = smul.u32 64, %s23
          %s201 = ssub.s32 4096, 4096
          %202 = vsyncadd [#allocation8], %s201
          %s203 = smul.addr %s199, 64
          %s204 = scalar_lea.hbm %s1, %s203
          %s205 = sshll.u32 [#allocation7], 4
          %s206 = int_to_ptr.vmem [resolvable:$true] %s205
          %211 = dma.hbm_to_vmem [thread:$0]  %s204, 4096, %s206, [#allocation8], 64, 64, 4
        $region16: #{tpu_custom_call.1} parent=11 // pred_fallthru
          _
        // Predicated region
        $region17: #{tpu_custom_call.1} parent=11 // pred_check
          %p212 = pneg %p103
        $region18: #{tpu_custom_call.1} parent=11 // pred_check_branch
          %214 = sbr.rel (%p212) target = $region20
        $region19: #{tpu_custom_call.1} parent=11 // pred_region
          %s215 = smul.u32 4, %s23
          %p216 = scmp.lt.s32.totalorder %s215, 3
          %s217 = scalar_select %p216, %s215, 3
          %s218 = scalar_lea.vmem %s2, %s217
          %s219 = smul.u32 4, %s23
        $region20: #{tpu_custom_call.1} parent=11 // pred_fallthru
          _
      $region12: #{tpu_custom_call.1} parent=5 // pred_fallthru
        _
      %p220 = scmp.lt.s32.totalorder %s13, 2
      // Predicated region
      $region21: #{tpu_custom_call.1} parent=5 // pred_check
        %p221 = pneg %p220
      $region22: #{tpu_custom_call.1} parent=5 // pred_check_branch
        %223 = sbr.rel (%p221) target = $region24
      $region23: #{tpu_custom_call.1} parent=5 // pred_region
        // Predicated region
        $region25: #{tpu_custom_call.1} parent=23 // pred_check
          %p224 = pneg %p45
        $region26: #{tpu_custom_call.1} parent=23 // pred_check_branch
          %226 = sbr.rel (%p224) target = $region28
        $region27: #{tpu_custom_call.1} parent=23 // pred_region
          %s227 = smul.u32 2, %s20
          %p228 = scmp.lt.s32.totalorder %s227, 3
          %s229 = scalar_select %p228, %s227, 3
          %s230 = smul.addr %s229, 8
          %s231 = scalar_lea.vmem %s0, %s230
          %s232 = smul.u32 2, %s20
        $region28: #{tpu_custom_call.1} parent=23 // pred_fallthru
          _
        // Predicated region
        $region29: #{tpu_custom_call.1} parent=23 // pred_check
          %p233 = pneg %p123
        $region30: #{tpu_custom_call.1} parent=23 // pred_check_branch
          %235 = sbr.rel (%p233) target = $region32
        $region31: #{tpu_custom_call.1} parent=23 // pred_region
          %s236 = smul.u32 2, %s20
          %p237 = scmp.lt.s32.totalorder %s236, 3
          %s238 = scalar_select %p237, %s236, 3
          %s239 = smul.addr %s238, 8
          %s240 = scalar_lea.vmem %s3, %s239
          %s241 = smul.u32 2, %s20
        $region32: #{tpu_custom_call.1} parent=23 // pred_fallthru
          _
      $region24: #{tpu_custom_call.1} parent=5 // pred_fallthru
        _
      %p242 = scmp.le.s32.totalorder 1, %s13
      %p243 = scmp.lt.s32.totalorder %s13, 3
      %p244 = pnand %p242, %p243
      %p245 = pneg %p244
      // Predicated region
      $region33: #{tpu_custom_call.1} parent=5 // pred_check
        _
      $region34: #{tpu_custom_call.1} parent=5 // pred_check_branch
        %247 = sbr.rel (%p244) target = $region36
      $region35: #{tpu_custom_call.1} parent=5 // pred_region
        %s248 = ssub.s32 %s13, 1
        // Predicated region
        $region37: #{tpu_custom_call.1} parent=35 // pred_check
          %p249 = pneg %p77
        $region38: #{tpu_custom_call.1} parent=35 // pred_check_branch
          %251 = sbr.rel (%p249) target = $region40
        $region39: #{tpu_custom_call.1} parent=35 // pred_region
          %252 = dma.done [#allocation8], 4096
        $region40: #{tpu_custom_call.1} parent=35 // pred_fallthru
          _
        %s253 = smul.u32 2, %s22
        %p254 = scmp.lt.s32.totalorder %s253, 3
        %s255 = scalar_select %p254, %s253, 3
        %s256 = smul.addr %s255, 8
        %s257 = scalar_lea.vmem %s0, %s256
        %p258 = pneg %p51
        %p259 = pneg %p48
        %p260 = pneg %p77
        %p261 = pneg %p74
        %s262 = smul.u32 4, %s23
        %p263 = scmp.lt.s32.totalorder %s262, 3
        %s264 = scalar_select %p263, %s262, 3
        %s265 = scalar_lea.vmem %s2, %s264
        %p266 = pneg %p103
        %p267 = pneg %p100
        %s268 = smul.u32 2, %s22
        %p269 = scmp.lt.s32.totalorder %s268, 3
        %s270 = scalar_select %p269, %s268, 3
        %s271 = smul.addr %s270, 8
        %s272 = scalar_lea.vmem %s3, %s271
        %p273 = pneg %p129
        %p274 = pneg %p126
        %p275 = pneg %p155
        %p276 = pneg %p152
        %s277 = smul.u32 2, %s22
        %p278 = scmp.lt.s32.totalorder %s277, 3
        %s279 = scalar_select %p278, %s277, 3
        %s280 = smul.addr %s279, 8
        %s281 = scalar_lea.vmem %s4, %s280
        %p282 = pneg %p181
        %p283 = pneg %p178
        %s284 = smul.u32 2, %s22
        %p285 = scmp.lt.s32.totalorder %s284, 3
        %s286 = scalar_select %p285, %s284, 3
        %s287 = smul.addr %s286, 8
        %s288 = scalar_lea.vmem %s5, %s287
        %s289 = smul.u32 2, %s22
        %p290 = scmp.lt.s32.totalorder %s289, 3
        %s291 = scalar_select %p290, %s289, 3
        %s292 = smul.addr %s291, 8
        %s293 = scalar_lea.vmem %s0, %s292
        %s294 = smul.u32 2, %s22
        %s295 = smul.u32 64, %s23
        %s296 = smul.u32 4, %s23
        %p297 = scmp.lt.s32.totalorder %s296, 3
        %s298 = scalar_select %p297, %s296, 3
        %s299 = scalar_lea.vmem %s2, %s298
        %s300 = smul.u32 4, %s23
        %s301 = smul.u32 2, %s22
        %p302 = scmp.lt.s32.totalorder %s301, 3
        %s303 = scalar_select %p302, %s301, 3
        %s304 = smul.addr %s303, 8
        %s305 = scalar_lea.vmem %s3, %s304
        %s306 = smul.u32 2, %s22
        %s307 = smul.u32 2, %s22
        %p308 = scmp.lt.s32.totalorder %s307, 3
        %s309 = scalar_select %p308, %s307, 3
        %s310 = smul.addr %s309, 8
        %s311 = scalar_lea.vmem %s4, %s310
        %s312 = smul.u32 2, %s22
        %s313 = smul.u32 2, %s22
        %p314 = scmp.lt.s32.totalorder %s313, 3
        %s315 = scalar_select %p314, %s313, 3
        %s316 = smul.addr %s315, 8
        %s317 = scalar_lea.vmem %s5, %s316
        %s318 = smul.u32 2, %s22
        %p320 = scmp.eq.s32.totalorder %s23, 0
        // Predicated region
        $region41: #{tpu_custom_call.1} parent=35 // pred_check
          %p321 = pneg %p320
        $region42: #{tpu_custom_call.1} parent=35 // pred_check_branch
          %323 = sbr.rel (%p321) target = $region44
        $region43: #{tpu_custom_call.1} parent=35 // pred_region
          %v324 = vld [vmem:[%s293] sm:$0xff]
          %v325 = vld [vmem:[%s293 + $0x8] sm:$0xff]
          %v326 = vmul.f32 %v324, %v324
          %v327 = vmul.f32 %v325, %v325
          %328 = vadd.xlane.f32.xlu0 %v326
          %v329 = vpop.xlane.xlu0 %328
          %330 = vadd.xlane.f32.xlu0 %v327
          %v331 = vpop.xlane.xlu0 %330
          %v332 = vmax.f32 %v329, 1e-24
          %v333 = vmax.f32 %v331, 1e-24
          %v334 = vrsqrt.pop %v332
          %v335 = vrsqrt.pop %v333
          %v336 = vmul.f32 %v324, %v334
          %v337 = vmul.f32 %v325, %v335
          %v338 = vpack.c.bf16 %v337, %v336
          %339 = vst [vmem:[#allocation2] sm:$0xff] %v338
          %vm340 = vcmask 7168
          %341 = vst.msk [vmem:[#allocation3] sm:$0xff] %vm340, -1e+30
          %342 = vst.msk [vmem:[#allocation3 + $0x8] sm:$0xff] %vm340, -1e+30
          %343 = vst.msk [vmem:[#allocation4] sm:$0xff] %vm340, 0.0
          %344 = vst.msk [vmem:[#allocation4 + $0x8] sm:$0xff] %vm340, 0.0
          %345 = vst.msk [vmem:[#allocation5] sm:$0xff] %vm340, 0.0
          %346 = vst.msk [vmem:[#allocation5 + $0x8] sm:$0xff] %vm340, 0.0
          %347 = vst.msk [vmem:[#allocation6] sm:$0xff] %vm340, 0
          %348 = vst.msk [vmem:[#allocation6 + $0x8] sm:$0xff] %vm340, 0
        $region44: #{tpu_custom_call.1} parent=35 // pred_fallthru
          _
        %v349 = vld [vmem:[#allocation2] sm:$0xff]
        %v350 = vld [vmem:[#allocation7] sm:$0xf]
        %v351 = vld [vmem:[#allocation7 + $0x4] sm:$0xf]
        %v352 = vld [vmem:[#allocation7 + $0x8] sm:$0xf]
        %v353 = vld [vmem:[#allocation7 + $0xc] sm:$0xf]
        %v354 = vld [vmem:[#allocation7 + $0x10] sm:$0xf]
        %v355 = vld [vmem:[#allocation7 + $0x14] sm:$0xf]
        %v356 = vld [vmem:[#allocation7 + $0x18] sm:$0xf]
        %v357 = vld [vmem:[#allocation7 + $0x1c] sm:$0xf]
        %v358 = vld [vmem:[#allocation7 + $0x20] sm:$0xf]
        %v359 = vld [vmem:[#allocation7 + $0x24] sm:$0xf]
        %v360 = vld [vmem:[#allocation7 + $0x28] sm:$0xf]
        %v361 = vld [vmem:[#allocation7 + $0x2c] sm:$0xf]
        %v362 = vld [vmem:[#allocation7 + $0x30] sm:$0xf]
        %v363 = vld [vmem:[#allocation7 + $0x34] sm:$0xf]
        %v364 = vld [vmem:[#allocation7 + $0x38] sm:$0xf]
        %v365 = vld [vmem:[#allocation7 + $0x3c] sm:$0xf]
        %v366 = vld [vmem:[#allocation7 + $0x40] sm:$0xf]
        %v367 = vld [vmem:[#allocation7 + $0x44] sm:$0xf]
        %v368 = vld [vmem:[#allocation7 + $0x48] sm:$0xf]
        %v369 = vld [vmem:[#allocation7 + $0x4c] sm:$0xf]
        %v370 = vld [vmem:[#allocation7 + $0x50] sm:$0xf]
        %v371 = vld [vmem:[#allocation7 + $0x54] sm:$0xf]
        %v372 = vld [vmem:[#allocation7 + $0x58] sm:$0xf]
        %v373 = vld [vmem:[#allocation7 + $0x5c] sm:$0xf]
        %v374 = vld [vmem:[#allocation7 + $0x60] sm:$0xf]
        %v375 = vld [vmem:[#allocation7 + $0x64] sm:$0xf]
        %v376 = vld [vmem:[#allocation7 + $0x68] sm:$0xf]
        %v377 = vld [vmem:[#allocation7 + $0x6c] sm:$0xf]
        %v378 = vld [vmem:[#allocation7 + $0x70] sm:$0xf]
        %v379 = vld [vmem:[#allocation7 + $0x74] sm:$0xf]
        %v380 = vld [vmem:[#allocation7 + $0x78] sm:$0xf]
        %v381 = vld [vmem:[#allocation7 + $0x7c] sm:$0xf]
        %v382 = vld [vmem:[#allocation7 + $0x80] sm:$0xf]
        %v383 = vld [vmem:[#allocation7 + $0x84] sm:$0xf]
        %v384 = vld [vmem:[#allocation7 + $0x88] sm:$0xf]
        %v385 = vld [vmem:[#allocation7 + $0x8c] sm:$0xf]
        %v386 = vld [vmem:[#allocation7 + $0x90] sm:$0xf]
        %v387 = vld [vmem:[#allocation7 + $0x94] sm:$0xf]
        %v388 = vld [vmem:[#allocation7 + $0x98] sm:$0xf]
        %v389 = vld [vmem:[#allocation7 + $0x9c] sm:$0xf]
        %v390 = vld [vmem:[#allocation7 + $0xa0] sm:$0xf]
        %v391 = vld [vmem:[#allocation7 + $0xa4] sm:$0xf]
        %v392 = vld [vmem:[#allocation7 + $0xa8] sm:$0xf]
        %v393 = vld [vmem:[#allocation7 + $0xac] sm:$0xf]
        %v394 = vld [vmem:[#allocation7 + $0xb0] sm:$0xf]
        %v395 = vld [vmem:[#allocation7 + $0xb4] sm:$0xf]
        %v396 = vld [vmem:[#allocation7 + $0xb8] sm:$0xf]
        %v397 = vld [vmem:[#allocation7 + $0xbc] sm:$0xf]
        %v398 = vld [vmem:[#allocation7 + $0xc0] sm:$0xf]
        %v399 = vld [vmem:[#allocation7 + $0xc4] sm:$0xf]
        %v400 = vld [vmem:[#allocation7 + $0xc8] sm:$0xf]
        %v401 = vld [vmem:[#allocation7 + $0xcc] sm:$0xf]
        %v402 = vld [vmem:[#allocation7 + $0xd0] sm:$0xf]
        %v403 = vld [vmem:[#allocation7 + $0xd4] sm:$0xf]
        %v404 = vld [vmem:[#allocation7 + $0xd8] sm:$0xf]
        %v405 = vld [vmem:[#allocation7 + $0xdc] sm:$0xf]
        %v406 = vld [vmem:[#allocation7 + $0xe0] sm:$0xf]
        %v407 = vld [vmem:[#allocation7 + $0xe4] sm:$0xf]
        %v408 = vld [vmem:[#allocation7 + $0xe8] sm:$0xf]
        %v409 = vld [vmem:[#allocation7 + $0xec] sm:$0xf]
        %v410 = vld [vmem:[#allocation7 + $0xf0] sm:$0xf]
        %v411 = vld [vmem:[#allocation7 + $0xf4] sm:$0xf]
        %v412 = vld [vmem:[#allocation7 + $0xf8] sm:$0xf]
        %v413 = vld [vmem:[#allocation7 + $0xfc] sm:$0xf]
        %v478 = vunpack.c.l.b16 %v350
        %v479 = vunpack.c.l.b16 %v351
        %v480 = vunpack.c.l.b16 %v352
        %v481 = vunpack.c.l.b16 %v353
        %v482 = vunpack.c.l.b16 %v354
        %v483 = vunpack.c.l.b16 %v355
        %v484 = vunpack.c.l.b16 %v356
        %v485 = vunpack.c.l.b16 %v357
        %v486 = vunpack.c.l.b16 %v358
        %v487 = vunpack.c.l.b16 %v359
        %v488 = vunpack.c.l.b16 %v360
        %v489 = vunpack.c.l.b16 %v361
        %v490 = vunpack.c.l.b16 %v362
        %v491 = vunpack.c.l.b16 %v363
        %v492 = vunpack.c.l.b16 %v364
        %v493 = vunpack.c.l.b16 %v365
        %v494 = vunpack.c.l.b16 %v366
        %v495 = vunpack.c.l.b16 %v367
        %v496 = vunpack.c.l.b16 %v368
        %v497 = vunpack.c.l.b16 %v369
        %v498 = vunpack.c.l.b16 %v370
        %v499 = vunpack.c.l.b16 %v371
        %v500 = vunpack.c.l.b16 %v372
        %v501 = vunpack.c.l.b16 %v373
        %v502 = vunpack.c.l.b16 %v374
        %v503 = vunpack.c.l.b16 %v375
        %v504 = vunpack.c.l.b16 %v376
        %v505 = vunpack.c.l.b16 %v377
        %v506 = vunpack.c.l.b16 %v378
        %v507 = vunpack.c.l.b16 %v379
        %v508 = vunpack.c.l.b16 %v380
        %v509 = vunpack.c.l.b16 %v381
        %v510 = vunpack.c.l.b16 %v382
        %v511 = vunpack.c.l.b16 %v383
        %v512 = vunpack.c.l.b16 %v384
        %v513 = vunpack.c.l.b16 %v385
        %v514 = vunpack.c.l.b16 %v386
        %v515 = vunpack.c.l.b16 %v387
        %v516 = vunpack.c.l.b16 %v388
        %v517 = vunpack.c.l.b16 %v389
        %v518 = vunpack.c.l.b16 %v390
        %v519 = vunpack.c.l.b16 %v391
        %v520 = vunpack.c.l.b16 %v392
        %v521 = vunpack.c.l.b16 %v393
        %v522 = vunpack.c.l.b16 %v394
        %v523 = vunpack.c.l.b16 %v395
        %v524 = vunpack.c.l.b16 %v396
        %v525 = vunpack.c.l.b16 %v397
        %v526 = vunpack.c.l.b16 %v398
        %v527 = vunpack.c.l.b16 %v399
        %v528 = vunpack.c.l.b16 %v400
        %v529 = vunpack.c.l.b16 %v401
        %v530 = vunpack.c.l.b16 %v402
        %v531 = vunpack.c.l.b16 %v403
        %v532 = vunpack.c.l.b16 %v404
        %v533 = vunpack.c.l.b16 %v405
        %v534 = vunpack.c.l.b16 %v406
        %v535 = vunpack.c.l.b16 %v407
        %v536 = vunpack.c.l.b16 %v408
        %v537 = vunpack.c.l.b16 %v409
        %v538 = vunpack.c.l.b16 %v410
        %v539 = vunpack.c.l.b16 %v411
        %v540 = vunpack.c.l.b16 %v412
        %v541 = vunpack.c.l.b16 %v413
        %v542 = vpack.c.b16 %v479, %v478
        %v543 = vpack.c.b16 %v481, %v480
        %v544 = vpack.c.b16 %v483, %v482
        %v545 = vpack.c.b16 %v485, %v484
        %v546 = vpack.c.b16 %v487, %v486
        %v547 = vpack.c.b16 %v489, %v488
        %v548 = vpack.c.b16 %v491, %v490
        %v549 = vpack.c.b16 %v493, %v492
        %v550 = vpack.c.b16 %v495, %v494
        %v551 = vpack.c.b16 %v497, %v496
        %v552 = vpack.c.b16 %v499, %v498
        %v553 = vpack.c.b16 %v501, %v500
        %v554 = vpack.c.b16 %v503, %v502
        %v555 = vpack.c.b16 %v505, %v504
        %v556 = vpack.c.b16 %v507, %v506
        %v557 = vpack.c.b16 %v509, %v508
        %v558 = vpack.c.b16 %v511, %v510
        %v559 = vpack.c.b16 %v513, %v512
        %v560 = vpack.c.b16 %v515, %v514
        %v561 = vpack.c.b16 %v517, %v516
        %v562 = vpack.c.b16 %v519, %v518
        %v563 = vpack.c.b16 %v521, %v520
        %v564 = vpack.c.b16 %v523, %v522
        %v565 = vpack.c.b16 %v525, %v524
        %v566 = vpack.c.b16 %v527, %v526
        %v567 = vpack.c.b16 %v529, %v528
        %v568 = vpack.c.b16 %v531, %v530
        %v569 = vpack.c.b16 %v533, %v532
        %v570 = vpack.c.b16 %v535, %v534
        %v571 = vpack.c.b16 %v537, %v536
        %v572 = vpack.c.b16 %v539, %v538
        %v573 = vpack.c.b16 %v541, %v540
        %606 = vmatprep.subr.bf16.mxu0 0
        %607 = vmatpush1.bf16.xpose.msra.mxu0 %v542
        %608 = vmatprep.subr.bf16.mxu0 0
        %609 = vmatpush1.bf16.xpose.msra.mxu0 %v543
        %610 = vmatprep.subr.bf16.mxu0 0
        %611 = vmatpush1.bf16.xpose.msra.mxu0 %v544
        %612 = vmatprep.subr.bf16.mxu0 0
        %613 = vmatpush1.bf16.xpose.msra.mxu0 %v545
        %614 = vmatprep.subr.bf16.mxu0 0
        %615 = vmatpush1.bf16.xpose.msra.mxu0 %v546
        %616 = vmatprep.subr.bf16.mxu0 0
        %617 = vmatpush1.bf16.xpose.msra.mxu0 %v547
        %618 = vmatprep.subr.bf16.mxu0 0
        %619 = vmatpush1.bf16.xpose.msra.mxu0 %v548
        %620 = vmatprep.subr.bf16.mxu0 0
        %621 = vmatpush1.bf16.xpose.msra.mxu0 %v549
        %622 = vmatprep.subr.bf16.mxu0 0
        %623 = vmatpush1.bf16.xpose.msra.mxu0 %v550
        %624 = vmatprep.subr.bf16.mxu0 0
        %625 = vmatpush1.bf16.xpose.msra.mxu0 %v551
        %626 = vmatprep.subr.bf16.mxu0 0
        %627 = vmatpush1.bf16.xpose.msra.mxu0 %v552
        %628 = vmatprep.subr.bf16.mxu0 0
        %629 = vmatpush1.bf16.xpose.msra.mxu0 %v553
        %630 = vmatprep.subr.bf16.mxu0 0
        %631 = vmatpush1.bf16.xpose.msra.mxu0 %v554
        %632 = vmatprep.subr.bf16.mxu0 0
        %633 = vmatpush1.bf16.xpose.msra.mxu0 %v555
        %634 = vmatprep.subr.bf16.mxu0 0
        %635 = vmatpush1.bf16.xpose.msra.mxu0 %v556
        %636 = vmatprep.subr.bf16.mxu0 0
        %637 = vmatpush1.bf16.xpose.msra.mxu0 %v557
        %638 = vmatprep.mubr.bf16.mxu0 0
        %639 = vmatmul.mubr.bf16.gmra.mrb[0].mxu0 %v349
        %v640 = vpop.f32.mrb[0].mxu0
        %v641 = vadd.f32 0.0, %v640
        %v642 = vpop.f32.mrb[0].mxu0
        %v643 = vadd.f32 0.0, %v642
        %v644 = vpop.f32.mrb[0].mxu0
        %v645 = vadd.f32 0.0, %v644
        %v646 = vpop.f32.mrb[0].mxu0
        %v647 = vadd.f32 0.0, %v646
        %648 = vdwg.mxu0
        %649 = vmatprep.subr.bf16.mxu0 0
        %650 = vmatpush1.bf16.xpose.msra.mxu0 %v558
        %651 = vmatprep.subr.bf16.mxu0 0
        %652 = vmatpush1.bf16.xpose.msra.mxu0 %v559
        %653 = vmatprep.subr.bf16.mxu0 0
        %654 = vmatpush1.bf16.xpose.msra.mxu0 %v560
        %655 = vmatprep.subr.bf16.mxu0 0
        %656 = vmatpush1.bf16.xpose.msra.mxu0 %v561
        %657 = vmatprep.subr.bf16.mxu0 0
        %658 = vmatpush1.bf16.xpose.msra.mxu0 %v562
        %659 = vmatprep.subr.bf16.mxu0 0
        %660 = vmatpush1.bf16.xpose.msra.mxu0 %v563
        %661 = vmatprep.subr.bf16.mxu0 0
        %662 = vmatpush1.bf16.xpose.msra.mxu0 %v564
        %663 = vmatprep.subr.bf16.mxu0 0
        %664 = vmatpush1.bf16.xpose.msra.mxu0 %v565
        %665 = vmatprep.subr.bf16.mxu0 0
        %666 = vmatpush1.bf16.xpose.msra.mxu0 %v566
        %667 = vmatprep.subr.bf16.mxu0 0
        %668 = vmatpush1.bf16.xpose.msra.mxu0 %v567
        %669 = vmatprep.subr.bf16.mxu0 0
        %670 = vmatpush1.bf16.xpose.msra.mxu0 %v568
        %671 = vmatprep.subr.bf16.mxu0 0
        %672 = vmatpush1.bf16.xpose.msra.mxu0 %v569
        %673 = vmatprep.subr.bf16.mxu0 0
        %674 = vmatpush1.bf16.xpose.msra.mxu0 %v570
        %675 = vmatprep.subr.bf16.mxu0 0
        %676 = vmatpush1.bf16.xpose.msra.mxu0 %v571
        %677 = vmatprep.subr.bf16.mxu0 0
        %678 = vmatpush1.bf16.xpose.msra.mxu0 %v572
        %679 = vmatprep.subr.bf16.mxu0 0
        %680 = vmatpush1.bf16.xpose.msra.mxu0 %v573
        %681 = vmatprep.mubr.bf16.mxu0 0
        %682 = vmatmul.mubr.bf16.gmra.mrb[0].mxu0 %v349
        %v683 = vpop.f32.mrb[0].mxu0
        %v684 = vadd.f32 0.0, %v683
        %v685 = vpop.f32.mrb[0].mxu0
        %v686 = vadd.f32 0.0, %v685
        %v687 = vpop.f32.mrb[0].mxu0
        %v688 = vadd.f32 0.0, %v687
        %v689 = vpop.f32.mrb[0].mxu0
        %v690 = vadd.f32 0.0, %v689
        %691 = vdwg.mxu0
        %v692 = vld [vmem:[%s299] sm:$0xf]
        %v694 = vlaneseq
        %v695 = vshrl.u32 %v694, 7
        %v696 = vsub.s32 0, %v695
        %v697 = vrot.slane %v692, %v696
        %v698 = vlaneseq
        %v699 = vshrl.u32 %v698, 7
        %v700 = vsub.s32 1, %v699
        %v701 = vrot.slane %v692, %v700
        %v702 = vlaneseq
        %v703 = vshrl.u32 %v702, 7
        %v704 = vsub.s32 2, %v703
        %v705 = vrot.slane %v692, %v704
        %v706 = vlaneseq
        %v707 = vshrl.u32 %v706, 7
        %v708 = vsub.s32 3, %v707
        %v709 = vrot.slane %v692, %v708
        %v714 = vmul.f32 %v641, %v697
        %v715 = vmul.f32 %v643, %v701
        %v716 = vmul.f32 %v684, %v705
        %v717 = vmul.f32 %v686, %v709
        %v718 = vmul.f32 %v645, %v697
        %v719 = vmul.f32 %v647, %v701
        %v720 = vmul.f32 %v688, %v705
        %v721 = vmul.f32 %v690, %v709
        %v722 = vld [vmem:[%s305] sm:$0xff]
        %v723 = vld [vmem:[%s305 + $0x8] sm:$0xff]
        %v724 = vlaneseq
        %v725 = vand.u32 %v724, 127
        %v726 = vadd.s32 %v725, 128
        %v727 = vadd.s32 %v725, 256
        %v728 = vadd.s32 %v725, 384
        %s729 = smul.u32 %s23, 512
        %v730 = vstv %s729
        %v731 = vsub.s32 %v722, %v730
        %v732 = vsub.s32 %v723, %v730
        %733 = vset.pattern.permute.xlu0 0
        %734 = vperm.xlu0 %733, %v731
        %v735 = vpop.permute.xlu0 %734
        %736 = vset.pattern.permute.xlu0 0
        %737 = vperm.xlu0 %736, %v732
        %v738 = vpop.permute.xlu0 %737
        %vm739 = vcmp.eq.s32.totalorder %v725, %v735
        %vm740 = vcmp.eq.s32.totalorder %v726, %v735
        %vm741 = vcmp.eq.s32.totalorder %v727, %v735
        %vm742 = vcmp.eq.s32.totalorder %v728, %v735
        %vm743 = vcmp.eq.s32.totalorder %v725, %v738
        %vm744 = vcmp.eq.s32.totalorder %v726, %v738
        %vm745 = vcmp.eq.s32.totalorder %v727, %v738
        %vm746 = vcmp.eq.s32.totalorder %v728, %v738
        %v747 = vsel %vm739, %v714, 0.0
        %v748 = vsel %vm740, %v715, 0.0
        %v749 = vsel %vm741, %v716, 0.0
        %v750 = vsel %vm742, %v717, 0.0
        %v751 = vsel %vm743, %v718, 0.0
        %v752 = vsel %vm744, %v719, 0.0
        %v753 = vsel %vm745, %v720, 0.0
        %v754 = vsel %vm746, %v721, 0.0
        %v755 = vadd.f32 %v747, %v748
        %v756 = vadd.f32 %v755, %v749
        %v757 = vadd.f32 %v756, %v750
        %758 = vadd.xlane.f32.xlu0 %v757
        %v759 = vpop.xlane.xlu0 %758
        %v760 = vadd.f32 %v751, %v752
        %v761 = vadd.f32 %v760, %v753
        %v762 = vadd.f32 %v761, %v754
        %763 = vadd.xlane.f32.xlu0 %v762
        %v764 = vpop.xlane.xlu0 %763
        %v765 = vmax.f32 %v759, -1.0
        %v766 = vmax.f32 %v764, -1.0
        %v767 = vmin.f32 %v765, 1.0
        %v768 = vmin.f32 %v766, 1.0
        %v769 = vsub.f32 1.0, %v767
        %v770 = vsub.f32 1.0, %v768
        %v771 = vmax.f32 %v769, 0.0
        %v772 = vmax.f32 %v770, 0.0
        %v773 = vrsqrt.pop %v771
        %v774 = vmul.f32 %v771, %v773
        %vm775 = vcmp.eq.f32.partialorder %v771, inf
        %v776 = vsel %vm775, %v771, %v774
        %vm777 = vcmp.eq.f32.partialorder %v771, 0.0
        %v778 = vand.u32 %v771, 2147483648
        %v779 = vsel %vm777, %v778, %v776
        %v780 = vrsqrt.pop %v772
        %v781 = vmul.f32 %v772, %v780
        %vm782 = vcmp.eq.f32.partialorder %v772, inf
        %v783 = vsel %vm782, %v772, %v781
        %vm784 = vcmp.eq.f32.partialorder %v772, 0.0
        %v785 = vand.u32 %v772, 2147483648
        %v786 = vsel %vm784, %v785, %v783
        %v787 = vadd.f32 %v767, 1.0
        %v788 = vadd.f32 %v768, 1.0
        %v789 = vmax.f32 %v787, 0.0
        %v790 = vmax.f32 %v788, 0.0
        %v791 = vrsqrt.pop %v789
        %v792 = vmul.f32 %v789, %v791
        %vm793 = vcmp.eq.f32.partialorder %v789, inf
        %v794 = vsel %vm793, %v789, %v792
        %vm795 = vcmp.eq.f32.partialorder %v789, 0.0
        %v796 = vand.u32 %v789, 2147483648
        %v797 = vsel %vm795, %v796, %v794
        %v798 = vrsqrt.pop %v790
        %v799 = vmul.f32 %v790, %v798
        %vm800 = vcmp.eq.f32.partialorder %v790, inf
        %v801 = vsel %vm800, %v790, %v799
        %vm802 = vcmp.eq.f32.partialorder %v790, 0.0
        %v803 = vand.u32 %v790, 2147483648
        %v804 = vsel %vm802, %v803, %v801
        %v805 = vrcp.pop %v797
        %v806 = vmul.f32 %v779, %v805
        %v807 = vrcp.pop %v804
        %v808 = vmul.f32 %v786, %v807
        %vm809 = vcmp.gt.f32.partialorder %v806, 2.4142137
        %vm810 = vcmp.gt.f32.partialorder %v808, 2.4142137
        %vm811 = vcmp.gt.f32.partialorder %v806, 0.41421357
        %vm812 = vcmp.gt.f32.partialorder %v808, 0.41421357
        %v813 = vrcp.pop %v806
        %v814 = vmul.f32 -1.0, %v813
        %v815 = vrcp.pop %v808
        %v816 = vmul.f32 -1.0, %v815
        %v817 = vsub.f32 %v806, 1.0
        %v818 = vsub.f32 %v808, 1.0
        %v819 = vadd.f32 %v806, 1.0
        %v820 = vadd.f32 %v808, 1.0
        %v821 = vrcp.pop %v819
        %v822 = vmul.f32 %v817, %v821
        %v823 = vrcp.pop %v820
        %v824 = vmul.f32 %v818, %v823
        %v825 = vsel %vm811, %v822, %v806
        %v826 = vsel %vm812, %v824, %v808
        %v827 = vsel %vm809, %v814, %v825
        %v828 = vsel %vm810, %v816, %v826
        %v829 = vsel %vm811, 0.7853982, 0.0
        %v830 = vsel %vm812, 0.7853982, 0.0
        %v831 = vsel %vm809, 1.5707964, %v829
        %v832 = vsel %vm810, 1.5707964, %v830
        %v833 = vmul.f32 %v827, %v827
        %v834 = vmul.f32 %v828, %v828
        %v835 = vmul.f32 %v833, 0.080537446
        %v836 = vmul.f32 %v834, 0.080537446
        %v837 = vsub.f32 %v835, 0.13877685
        %v838 = vsub.f32 %v836, 0.13877685
        %v839 = vmul.f32 %v837, %v833
        %v840 = vmul.f32 %v838, %v834
        %v841 = vadd.f32 %v839, 0.19977711
        %v842 = vadd.f32 %v840, 0.19977711
        %v843 = vmul.f32 %v841, %v833
        %v844 = vmul.f32 %v842, %v834
        %v845 = vsub.f32 %v843, 0.3333295
        %v846 = vsub.f32 %v844, 0.3333295
        %v847 = vadd.f32 %v831, %v827
        %v848 = vadd.f32 %v832, %v828
        %v849 = vmul.f32 %v827, %v833
        %v850 = vmul.f32 %v828, %v834
        %v851 = vmul.f32 %v849, %v845
        %v852 = vmul.f32 %v850, %v846
        %v853 = vadd.f32 %v847, %v851
        %v854 = vadd.f32 %v848, %v852
        %v855 = vmul.f32 %v853, 2.0
        %v856 = vmul.f32 %v854, 2.0
        %v857 = vmul.f32 %v855, 1.35
        %v858 = vmul.f32 %v856, 1.35
        %v859 = vmax.f32 %v857, 1e-12
        %v860 = vmax.f32 %v858, 1e-12
        %v861 = vmin.f32 %v859, 3.1415927
        %v862 = vmin.f32 %v860, 3.1415927
        %vm863 = vcmp.gt.f32.partialorder %v861, 1.5707964
        %vm864 = vcmp.gt.f32.partialorder %v862, 1.5707964
        %v865 = vsub.f32 3.1415927, %v861
        %v866 = vsub.f32 3.1415927, %v862
        %v867 = vsel %vm863, %v865, %v861
        %v868 = vsel %vm864, %v866, %v862
        %v869 = vmul.f32 %v867, %v867
        %v870 = vmul.f32 %v868, %v868
        %v871 = vmul.f32 %v869, 2.0876756e-09
        %v872 = vmul.f32 %v870, 2.0876756e-09
        %v873 = vadd.f32 %v871, -2.755732e-07
        %v874 = vadd.f32 %v872, -2.755732e-07
        %v875 = vmul.f32 %v869, %v873
        %v876 = vmul.f32 %v870, %v874
        %v877 = vadd.f32 %v875, 2.4801588e-05
        %v878 = vadd.f32 %v876, 2.4801588e-05
        %v879 = vmul.f32 %v869, %v877
        %v880 = vmul.f32 %v870, %v878
        %v881 = vadd.f32 %v879, -0.0013888889
        %v882 = vadd.f32 %v880, -0.0013888889
        %v883 = vmul.f32 %v869, %v881
        %v884 = vmul.f32 %v870, %v882
        %v885 = vadd.f32 %v883, 0.041666668
        %v886 = vadd.f32 %v884, 0.041666668
        %v887 = vmul.f32 %v869, %v885
        %v888 = vmul.f32 %v870, %v886
        %v889 = vadd.f32 %v887, -0.5
        %v890 = vadd.f32 %v888, -0.5
        %v891 = vmul.f32 %v869, %v889
        %v892 = vmul.f32 %v870, %v890
        %v893 = vadd.f32 %v891, 1.0
        %v894 = vadd.f32 %v892, 1.0
        %v895 = vsub.f32 0.0, %v893
        %v896 = vsub.f32 0.0, %v894
        %v897 = vsel %vm863, %v895, %v893
        %v898 = vsel %vm864, %v896, %v894
        %v899 = vsel %vm739, %v897, %v714
        %v900 = vsel %vm740, %v897, %v715
        %v901 = vsel %vm741, %v897, %v716
        %v902 = vsel %vm742, %v897, %v717
        %v903 = vsel %vm743, %v898, %v718
        %v904 = vsel %vm744, %v898, %v719
        %v905 = vsel %vm745, %v898, %v720
        %v906 = vsel %vm746, %v898, %v721
        %v907 = vmul.f32 %v899, 64.0
        %v908 = vmul.f32 %v900, 64.0
        %v909 = vmul.f32 %v901, 64.0
        %v910 = vmul.f32 %v902, 64.0
        %v911 = vmul.f32 %v903, 64.0
        %v912 = vmul.f32 %v904, 64.0
        %v913 = vmul.f32 %v905, 64.0
        %v914 = vmul.f32 %v906, 64.0
        %v915 = vmax.f32 %v907, %v909
        %v916 = vmax.f32 %v908, %v910
        %v917 = vmax.f32 %v915, %v916
        %918 = vmax.xlane.f32.xlu0 %v917
        %v919 = vpop.xlane.xlu0 %918
        %v920 = vmax.f32 %v911, %v913
        %v921 = vmax.f32 %v912, %v914
        %v922 = vmax.f32 %v920, %v921
        %923 = vmax.xlane.f32.xlu0 %v922
        %v924 = vpop.xlane.xlu0 %923
        %v925 = vld [vmem:[#allocation3] sm:$0xff]
        %v926 = vld [vmem:[#allocation3 + $0x8] sm:$0xff]
        %v927 = vmax.f32 %v925, %v919
        %v928 = vmax.f32 %v926, %v924
        %v929 = vsub.f32 %v925, %v927
        %v930 = vsub.f32 %v926, %v928
        %v931 = vmul.f32 %v929, 1.442695
        %v932 = vpow.pop %v931
        %v933 = vmul.f32 %v930, 1.442695
        %v934 = vpow.pop %v933
        %v935 = vld [vmem:[#allocation4] sm:$0xff]
        %v936 = vld [vmem:[#allocation4 + $0x8] sm:$0xff]
        %v937 = vmul.f32 %v935, %v932
        %v938 = vmul.f32 %v936, %v934
        %940 = vset.pattern.permute.xlu0 0
        %941 = vperm.xlu0 %940, %v927
        %v942 = vpop.permute.xlu0 %941
        %945 = vset.pattern.permute.xlu0 0
        %946 = vperm.xlu0 %945, %v928
        %v947 = vpop.permute.xlu0 %946
        %v949 = vsub.f32 %v907, %v942
        %v950 = vsub.f32 %v908, %v942
        %v951 = vsub.f32 %v909, %v942
        %v952 = vsub.f32 %v910, %v942
        %v953 = vsub.f32 %v911, %v947
        %v954 = vsub.f32 %v912, %v947
        %v955 = vsub.f32 %v913, %v947
        %v956 = vsub.f32 %v914, %v947
        %v957 = vmul.f32 %v949, 1.442695
        %v958 = vpow.pop %v957
        %v959 = vmul.f32 %v950, 1.442695
        %v960 = vpow.pop %v959
        %v961 = vmul.f32 %v951, 1.442695
        %v962 = vpow.pop %v961
        %v963 = vmul.f32 %v952, 1.442695
        %v964 = vpow.pop %v963
        %v965 = vmul.f32 %v953, 1.442695
        %v966 = vpow.pop %v965
        %v967 = vmul.f32 %v954, 1.442695
        %v968 = vpow.pop %v967
        %v969 = vmul.f32 %v955, 1.442695
        %v970 = vpow.pop %v969
        %v971 = vmul.f32 %v956, 1.442695
        %v972 = vpow.pop %v971
        %v973 = vadd.f32 %v958, %v960
        %v974 = vadd.f32 %v973, %v962
        %v975 = vadd.f32 %v974, %v964
        %976 = vadd.xlane.f32.xlu0 %v975
        %v977 = vpop.xlane.xlu0 %976
        %v978 = vadd.f32 %v966, %v968
        %v979 = vadd.f32 %v978, %v970
        %v980 = vadd.f32 %v979, %v972
        %981 = vadd.xlane.f32.xlu0 %v980
        %v982 = vpop.xlane.xlu0 %981
        %v983 = vadd.f32 %v937, %v977
        %v984 = vadd.f32 %v938, %v982
        %vm985 = vcmask 7168
        %986 = vst.msk [vmem:[#allocation4] sm:$0xff] %vm985, %v983
        %987 = vst.msk [vmem:[#allocation4 + $0x8] sm:$0xff] %vm985, %v984
        %vm988 = vcmp.ge.f32.partialorder %v907, %v919
        %vm989 = vcmp.ge.f32.partialorder %v908, %v919
        %vm990 = vcmp.ge.f32.partialorder %v909, %v919
        %vm991 = vcmp.ge.f32.partialorder %v910, %v919
        %vm992 = vcmp.ge.f32.partialorder %v911, %v924
        %vm993 = vcmp.ge.f32.partialorder %v912, %v924
        %vm994 = vcmp.ge.f32.partialorder %v913, %v924
        %vm995 = vcmp.ge.f32.partialorder %v914, %v924
        %v996 = vcvt.s32.f32 %v725
        %v997 = vcvt.s32.f32 %v726
        %v998 = vcvt.s32.f32 %v727
        %v999 = vcvt.s32.f32 %v728
        %v1000 = vsel %vm988, %v996, 1e+09
        %v1001 = vsel %vm989, %v997, 1e+09
        %v1002 = vsel %vm990, %v998, 1e+09
        %v1003 = vsel %vm991, %v999, 1e+09
        %v1004 = vsel %vm992, %v996, 1e+09
        %v1005 = vsel %vm993, %v997, 1e+09
        %v1006 = vsel %vm994, %v998, 1e+09
        %v1007 = vsel %vm995, %v999, 1e+09
        %v1008 = vmin.f32 %v1000, %v1002
        %v1009 = vmin.f32 %v1001, %v1003
        %v1010 = vmin.f32 %v1008, %v1009
        %1011 = vmin.xlane.f32.xlu0 %v1010
        %v1012 = vpop.xlane.xlu0 %1011
        %v1013 = vmin.f32 %v1004, %v1006
        %v1014 = vmin.f32 %v1005, %v1007
        %v1015 = vmin.f32 %v1013, %v1014
        %1016 = vmin.xlane.f32.xlu0 %v1015
        %v1017 = vpop.xlane.xlu0 %1016
        %v1018 = vcvt.f32.s32.to.zero.pseudo %v1012
        %v1019 = vcvt.f32.s32.to.zero.pseudo %v1017
        %v1020 = vadd.s32 %v1018, %v730
        %v1021 = vadd.s32 %v1019, %v730
        %vm1022 = vcmp.gt.f32.partialorder %v919, %v925
        %vm1023 = vcmp.gt.f32.partialorder %v924, %v926
        %v1024 = vld [vmem:[#allocation6] sm:$0xff]
        %v1025 = vld [vmem:[#allocation6 + $0x8] sm:$0xff]
        %v1026 = vsel %vm1022, %v1020, %v1024
        %v1027 = vsel %vm1023, %v1021, %v1025
        %1028 = vst.msk [vmem:[#allocation6] sm:$0xff] %vm985, %v1026
        %1029 = vst.msk [vmem:[#allocation6 + $0x8] sm:$0xff] %vm985, %v1027
        %1030 = vst.msk [vmem:[#allocation3] sm:$0xff] %vm985, %v927
        %1031 = vst.msk [vmem:[#allocation3 + $0x8] sm:$0xff] %vm985, %v928
        %vm1032 = vcmp.ge.s32.totalorder %v722, %v730
        %vm1033 = vcmp.ge.s32.totalorder %v723, %v730
        %s1034 = sadd.s32 %s23, 1
        %s1035 = smul.u32 %s1034, 512
        %v1036 = vstv %s1035
        %vm1037 = vcmp.lt.s32.totalorder %v722, %v1036
        %vm1038 = vcmp.lt.s32.totalorder %v723, %v1036
        %vm1039 = vmand %vm1032, %vm1037
        %vm1040 = vmand %vm1033, %vm1038
        %v1041 = vld [vmem:[#allocation5] sm:$0xff]
        %v1042 = vld [vmem:[#allocation5 + $0x8] sm:$0xff]
        %v1043 = vmul.f32 %v897, 64.0
        %v1044 = vmul.f32 %v898, 64.0
        %v1045 = vsel %vm1039, %v1043, 0.0
        %v1046 = vsel %vm1040, %v1044, 0.0
        %v1047 = vadd.f32 %v1041, %v1045
        %v1048 = vadd.f32 %v1042, %v1046
        %1049 = vst.msk [vmem:[#allocation5] sm:$0xff] %vm985, %v1047
        %1050 = vst.msk [vmem:[#allocation5 + $0x8] sm:$0xff] %vm985, %v1048
        // Predicated region
        $region45: #{tpu_custom_call.1} parent=35 // pred_check
          %p1051 = pneg %p320
        $region46: #{tpu_custom_call.1} parent=35 // pred_check_branch
          %1053 = sbr.rel (%p1051) target = $region48
        $region47: #{tpu_custom_call.1} parent=35 // pred_region
          %v1054 = vld [vmem:[#allocation3] sm:$0xff]
          %v1055 = vld [vmem:[#allocation3 + $0x8] sm:$0xff]
          %v1056 = vld [vmem:[#allocation4] sm:$0xff]
          %v1057 = vld [vmem:[#allocation4 + $0x8] sm:$0xff]
          %v1058 = vlog2.pop %v1056
          %v1059 = vmul.f32 %v1058, 0.6931472
          %v1060 = vlog2.pop %v1057
          %v1061 = vmul.f32 %v1060, 0.6931472
          %v1062 = vadd.f32 %v1054, %v1059
          %v1063 = vadd.f32 %v1055, %v1061
          %v1064 = vld [vmem:[#allocation5] sm:$0xff]
          %v1065 = vld [vmem:[#allocation5 + $0x8] sm:$0xff]
          %v1066 = vsub.f32 %v1062, %v1064
          %v1067 = vsub.f32 %v1063, %v1065
          %1068 = vst.msk [vmem:[%s311] sm:$0xff] %vm985, %v1066
          %1069 = vst.msk [vmem:[%s311 + $0x8] sm:$0xff] %vm985, %v1067
          %v1070 = vld [vmem:[#allocation6] sm:$0xff]
          %v1071 = vld [vmem:[#allocation6 + $0x8] sm:$0xff]
          %vm1072 = vcmp.eq.s32.totalorder %v1070, %v722
          %vm1073 = vcmp.eq.s32.totalorder %v1071, %v723
          %v1074 = vsel %vm1072, 1, 0
          %v1075 = vsel %vm1073, 1, 0
          %v1076 = vcvt.s32.f32 %v1074
          %v1077 = vcvt.s32.f32 %v1075
          %1078 = vst.msk [vmem:[%s317] sm:$0xff] %vm985, %v1076
          %1079 = vst.msk [vmem:[%s317 + $0x8] sm:$0xff] %vm985, %v1077
        $region48: #{tpu_custom_call.1} parent=35 // pred_fallthru
          _
        %s1080 = smul.u32 2, %s22
        %p1081 = scmp.lt.s32.totalorder %s1080, 3
        %s1082 = scalar_select %p1081, %s1080, 3
        %s1083 = smul.addr %s1082, 8
        %s1084 = scalar_lea.vmem %s4, %s1083
        %s1085 = smul.u32 2, %s22
        %p1086 = scmp.lt.s32.totalorder %s1085, 3
        %s1087 = scalar_select %p1086, %s1085, 3
        %s1088 = smul.addr %s1087, 8
        %s1089 = scalar_lea.vmem %s5, %s1088
        // Predicated region
        $region49: #{tpu_custom_call.1} parent=35 // pred_check
          %p1090 = pneg %p152
        $region50: #{tpu_custom_call.1} parent=35 // pred_check_branch
          %1092 = sbr.rel (%p1090) target = $region52
        $region51: #{tpu_custom_call.1} parent=35 // pred_region
          %s1093 = smul.u32 2, %s22
        $region52: #{tpu_custom_call.1} parent=35 // pred_fallthru
          _
        // Predicated region
        $region53: #{tpu_custom_call.1} parent=35 // pred_check
          %p1094 = pneg %p178
        $region54: #{tpu_custom_call.1} parent=35 // pred_check_branch
          %1096 = sbr.rel (%p1094) target = $region56
        $region55: #{tpu_custom_call.1} parent=35 // pred_region
          %s1097 = smul.u32 2, %s22
        $region56: #{tpu_custom_call.1} parent=35 // pred_fallthru
          _
      $region36: #{tpu_custom_call.1} parent=5 // pred_fallthru
        _
      %p1098 = scmp.le.s32.totalorder 2, %s13
      // Predicated region
      $region57: #{tpu_custom_call.1} parent=5 // pred_check
        %p1099 = pneg %p1098
      $region58: #{tpu_custom_call.1} parent=5 // pred_check_branch
        %1101 = sbr.rel (%p1099) target = $region60
      $region59: #{tpu_custom_call.1} parent=5 // pred_region
        %s1102 = ssub.s32 %s13, 2
        // Predicated region
        $region61: #{tpu_custom_call.1} parent=59 // pred_check
          %p1103 = pneg %p158
        $region62: #{tpu_custom_call.1} parent=59 // pred_check_branch
          %1105 = sbr.rel (%p1103) target = $region64
        $region63: #{tpu_custom_call.1} parent=59 // pred_region
          %s1106 = smul.u32 2, %s24
          %p1107 = scmp.lt.s32.totalorder %s1106, 3
          %s1108 = scalar_select %p1107, %s1106, 3
          %s1109 = smul.addr %s1108, 8
          %s1110 = scalar_lea.vmem %s4, %s1109
        $region64: #{tpu_custom_call.1} parent=59 // pred_fallthru
          _
        // Predicated region
        $region65: #{tpu_custom_call.1} parent=59 // pred_check
          %p1111 = pneg %p184
        $region66: #{tpu_custom_call.1} parent=59 // pred_check_branch
          %1113 = sbr.rel (%p1111) target = $region68
        $region67: #{tpu_custom_call.1} parent=59 // pred_region
          %s1114 = smul.u32 2, %s24
          %p1115 = scmp.lt.s32.totalorder %s1114, 3
          %s1116 = scalar_select %p1115, %s1114, 3
          %s1117 = smul.addr %s1116, 8
          %s1118 = scalar_lea.vmem %s5, %s1117
        $region68: #{tpu_custom_call.1} parent=59 // pred_fallthru
          _
      $region60: #{tpu_custom_call.1} parent=5 // pred_fallthru
        _
    $region6: #{tpu_custom_call.1} parent=1 // loop_footer
      %s17 = sadd.s32 1, %s13
    $region7: #{tpu_custom_call.1} parent=1 // loop_footer_branch
      %12 = sbr.rel target = $region3
    $region8: #{tpu_custom_call.1} parent=1 // loop_exit
      _
    %1119 = vsyncpa [#allocation8], 1
    %s1120 = scalar_lea.sflag [#allocation8], 1
    %1121 = vsyncpa %s1120, 1

</llo_original>
